<compile_context>
chip_gen: v7x
topology: tpu7x:2x2x1
jax: 0.10.0
libtpu: 0.0.40
codegen_flags: <defaults>
</compile_context>

<pallas_src>
import jax
import jax.numpy as jnp
from jax import lax
from jax.experimental import pallas as pl
from jax.experimental.pallas import tpu as pltpu


# ------------------------------ packing layout ------------------------------ #

def _round8(n):
    return ((n + 7) // 8) * 8


def _param_layout(D, H, num_layers):
    """Static row offsets of every parameter inside the single packed array."""
    offs = {"wih": [], "whh": [], "b": []}
    off = 0
    d_in = D
    for _ in range(num_layers):
        offs["wih"].append(off); off += _round8(d_in)
        offs["whh"].append(off); off += _round8(H)
        offs["b"].append(off);   off += 8
        d_in = H
    offs["w1"] = off; off += _round8(H)
    offs["b1"] = off; off += 8
    offs["w2"] = off; off += 8
    offs["b2"] = off; off += 8
    return offs, _round8(off)


def pack_params(params, D, H, num_layers, offs, total_rows):
    """Pack all weights/biases into one (total_rows, 4H) f32 array.

    The i/f/o gate columns of Wih, Whh, b are pre-scaled by 0.5 so the kernel can
    compute sigmoid(x) = 0.5*tanh(x/2) + 0.5 with a single tanh over the packed
    (Bp, 4H) gates tensor.
    """
    H2 = H // 2
    H4 = 4 * H
    sig_scale = jnp.concatenate([
        jnp.full((2 * H,), 0.5, jnp.float32),   # i, f
        jnp.ones((H,), jnp.float32),            # g (tanh, unscaled)
        jnp.full((H,), 0.5, jnp.float32),       # o
    ])
    pack = jnp.zeros((total_rows, H4), jnp.float32)
    d_in = D
    for l, (wih_t, whh_t, b) in enumerate(params["lstm"]):
        pack = pack.at[offs["wih"][l]:offs["wih"][l] + d_in, :].set(wih_t * sig_scale)
        pack = pack.at[offs["whh"][l]:offs["whh"][l] + H, :].set(whh_t * sig_scale)
        pack = pack.at[offs["b"][l]:offs["b"][l] + 1, :].set(b * sig_scale)
        d_in = H
    pack = pack.at[offs["w1"]:offs["w1"] + H, 0:H2].set(params["w1_t"])
    pack = pack.at[offs["b1"]:offs["b1"] + 1, 0:H2].set(params["b1"])
    pack = pack.at[offs["w2"]:offs["w2"] + 1, 0:H2].set(params["w2_t"].reshape(1, H2))
    pack = pack.at[offs["b2"]:offs["b2"] + 1, 0:1].set(params["b2"])
    return pack


# ----------------------------- fused Pallas kernel -------------------------- #

def make_fused_kernel(T, Bp, D, H, num_layers, offs):
    """kernel(x (T*Bp, D), packed params (rows, 4H)) -> (Bp, 1)."""
    H2 = H // 2

    def kernel(x_ref, p_ref, o_ref):
        # ---- layer 0 input projection: one MXU GEMM over all timesteps ----
        wih0 = p_ref[offs["wih"][0]:offs["wih"][0] + D, :].astype(jnp.bfloat16)
        b0 = p_ref[offs["b"][0]:offs["b"][0] + 1, :]
        x = x_ref[...].astype(jnp.bfloat16)                                 # (T*Bp, D)
        gates_all = jnp.dot(x, wih0, preferred_element_type=jnp.float32) + b0
        # Bp == 8  ->  every slice below starts at an 8-aligned sublane offset.
        gate_tiles = [gates_all[t * Bp:(t + 1) * Bp, :] for t in range(T)]

        h = None
        for l in range(num_layers):
            whh = p_ref[offs["whh"][l]:offs["whh"][l] + H, :].astype(jnp.bfloat16)
            last = (l == num_layers - 1)
            if not last:
                wih_n = p_ref[offs["wih"][l + 1]:offs["wih"][l + 1] + H, :].astype(
                    jnp.bfloat16)
                b_n = p_ref[offs["b"][l + 1]:offs["b"][l + 1] + 1, :]
                next_tiles = []

            h = jnp.zeros((Bp, H), jnp.float32)
            c = jnp.zeros((Bp, H), jnp.float32)

            # Fully unrolled recurrence: only h @ Whh (bf16, single MXU pass) plus
            # one tanh + cell update sit on the serial chain.
            for t in range(T):
                gates = gate_tiles[t] + jnp.dot(
                    h.astype(jnp.bfloat16), whh, preferred_element_type=jnp.float32)
                act = jnp.tanh(gates)                 # one full-width EUP push
                ifo = 0.5 * act + 0.5                 # sigmoid recovery (pre-scaled W)
                i = ifo[:, 0:H]
                f = ifo[:, H:2 * H]
                g = act[:, 2 * H:3 * H]
                og = ifo[:, 3 * H:4 * H]
                c = f * c + i * g
                h = og * jnp.tanh(c)
                if not last:
                    # Next layer's input projection, off the serial h@Whh chain;
                    # activations never leave vregs (no concatenate, no HBM).
                    next_tiles.append(jnp.dot(
                        h.astype(jnp.bfloat16), wih_n,
                        preferred_element_type=jnp.float32) + b_n)

            if not last:
                gate_tiles = next_tiles

        # ---- head: fc1 -> ReLU -> fc2 on the last hidden state (Bp, H) ----
        w1 = p_ref[offs["w1"]:offs["w1"] + H, 0:H2].astype(jnp.bfloat16)
        b1 = p_ref[offs["b1"]:offs["b1"] + 1, 0:H2]
        w2 = p_ref[offs["w2"]:offs["w2"] + 1, 0:H2]
        b2 = p_ref[offs["b2"]:offs["b2"] + 1, 0:1]

        z = jnp.dot(h.astype(jnp.bfloat16), w1, preferred_element_type=jnp.float32) + b1
        z = jnp.maximum(z, 0.0)
        # fc2 has a single output column: VPU multiply + lane reduction, no MXU.
        y = jnp.sum(z * w2, axis=-1, keepdims=True) + b2
        o_ref[...] = y.astype(o_ref.dtype)

    return kernel


# ------------------------------- wrapper ------------------------------------ #

def model_forward(x_bsd, params):
    """x_bsd: (batch, seq, input_size), like the PyTorch batch_first input."""
    B, T, D = x_bsd.shape
    H = params["lstm"][0][1].shape[0]
    num_layers = len(params["lstm"])
    assert (4 * H) % 128 == 0, "kernel assumes 4*H is a multiple of the 128-lane width"
    assert H % 8 == 0 and H // 2 >= 1

    Bp = max(_round8(B), 8)                 # pad batch to a full sublane group
    offs, total_rows = _param_layout(D, H, num_layers)

    # Time-major, batch-padded, flattened to (T*Bp, D): one big aligned input GEMM
    # and 8-aligned per-timestep sublane slices inside the kernel.
    x_tm = jnp.transpose(x_bsd, (1, 0, 2)).astype(jnp.float32)          # (T, B, D)
    x_tm = jnp.pad(x_tm, ((0, 0), (0, Bp - B), (0, 0))).reshape(T * Bp, D)

    pack = pack_params(params, D, H, num_layers, offs, total_rows)

    # Advisory cost estimate for XLA scheduling around the custom call.
    flops = 0
    d_in = D
    for _ in range(num_layers):
        flops += 2 * T * Bp * (d_in + H) * 4 * H
        d_in = H
    flops += 2 * Bp * (H * (H // 2) + (H // 2))
    transcendentals = num_layers * T * Bp * 5 * H
    bytes_accessed = 4 * (T * Bp * D + total_rows * 4 * H + Bp)

    kernel = make_fused_kernel(T, Bp, D, H, num_layers, offs)
    vmem = pl.BlockSpec(memory_space=pltpu.MemorySpace.VMEM)
    out = pl.pallas_call(
        kernel,
        out_shape=jax.ShapeDtypeStruct((Bp, 1), jnp.float32),
        in_specs=[vmem, vmem],
        out_specs=vmem,
        cost_estimate=pl.CostEstimate(
            flops=int(flops),
            transcendentals=int(transcendentals),
            bytes_accessed=int(bytes_accessed)),
    )(x_tm, pack)
    return out[:B]


# ------------------------- deterministic parameters ------------------------- #

def init_params(key, input_size, hidden_size, num_layers):
    H = hidden_size
    bound = 1.0 / jnp.sqrt(H)
    lstm_params = []
    for layer in range(num_layers):
        d_in = input_size if layer == 0 else H
        key, k1, k2, k3, k4 = jax.random.split(key, 5)
        w_ih = jax.random.uniform(k1, (4 * H, d_in), jnp.float32, -bound, bound)
        w_hh = jax.random.uniform(k2, (4 * H, H), jnp.float32, -bound, bound)
        b_ih = jax.random.uniform(k3, (4 * H,), jnp.float32, -bound, bound)
        b_hh = jax.random.uniform(k4, (4 * H,), jnp.float32, -bound, bound)
        lstm_params.append((w_ih.T, w_hh.T, (b_ih + b_hh).reshape(1, 4 * H)))

    key, k5, k6, k7, k8 = jax.random.split(key, 5)
    b1v = 1.0 / jnp.sqrt(H)
    w1 = jax.random.uniform(k5, (H // 2, H), jnp.float32, -b1v, b1v)
    b1 = jax.random.uniform(k6, (H // 2,), jnp.float32, -b1v, b1v)
    b2v = 1.0 / jnp.sqrt(H // 2)
    w2 = jax.random.uniform(k7, (1, H // 2), jnp.float32, -b2v, b2v)
    b2 = jax.random.uniform(k8, (1,), jnp.float32, -b2v, b2v)

    return {
        "lstm": lstm_params,
        "w1_t": w1.T, "b1": b1.reshape(1, -1),
        "w2_t": w2.T, "b2": b2.reshape(1, 1),
    }


# ----------------------------- pure-JAX reference --------------------------- #

def reference_forward(x_bsd, params):
    h_seq = jnp.transpose(x_bsd, (1, 0, 2)).astype(jnp.float32)
    for (w_ih_t, w_hh_t, b) in params["lstm"]:
        T, B, _ = h_seq.shape
        H = w_hh_t.shape[0]

        def step(carry, x_t):
            h, c = carry
            g = x_t @ w_ih_t + h @ w_hh_t + b
            i = jax.nn.sigmoid(g[:, :H])
            f = jax.nn.sigmoid(g[:, H:2 * H])
            gg = jnp.tanh(g[:, 2 * H:3 * H])
            o = jax.nn.sigmoid(g[:, 3 * H:])
            c = f * c + i * gg
            h = o * jnp.tanh(c)
            return (h, c), h

        (_, _), hs = lax.scan(step, (jnp.zeros((B, H)), jnp.zeros((B, H))), h_seq)
        h_seq = hs
    h_last = h_seq[-1]
    z = jnp.maximum(h_last @ params["w1_t"] + params["b1"], 0.0)
    return z @ params["w2_t"] + params["b2"]


# ---------------------------------- main ------------------------------------ #

if __name__ == "__main__":
    input_size, hidden_size, num_layers = 16, 32, 2
    batch, seq = 4, 8

    key = jax.random.PRNGKey(0)
    key, kx = jax.random.split(key)
    x = jax.random.normal(kx, (batch, seq, input_size), jnp.float32)

    params = init_params(key, input_size, hidden_size, num_layers)

    fwd = jax.jit(model_forward)
    out = jax.block_until_ready(fwd(x, params))

    ref = reference_forward(x, params)
    assert out.shape == (batch, 1), out.shape
    # bf16 MXU operands in the kernel -> relaxed tolerance vs. the f32 reference.
    assert jnp.allclose(out, ref, atol=2e-2, rtol=2e-2), (out, ref)

    print("KERNEL_OK")
</pallas_src>

<mosaic_0001>
module attributes {stable_mosaic.version = 11 : i64} {
  func.func @kernel(%arg0: memref<64x16xf32, #tpu.memory_space<vmem>>, %arg1: memref<184x128xf32, #tpu.memory_space<vmem>>, %arg2: memref<8x1xf32, #tpu.memory_space<vmem>>) attributes {dimension_semantics = [], scalar_prefetch = 0 : i64, scratch_operands = 0 : i64, tpu.core_type = #tpu.core_type<tc>} {
    %c0 = arith.constant 0 : index
    %c0_0 = arith.constant 0 : index
    %0 = vector.load %arg1[%c0, %c0_0] : memref<184x128xf32, #tpu.memory_space<vmem>>, vector<16x128xf32>
    %1 = arith.truncf %0 : vector<16x128xf32> to vector<16x128xbf16>
    %c48 = arith.constant 48 : index
    %c0_1 = arith.constant 0 : index
    %2 = vector.load %arg1[%c48, %c0_1] : memref<184x128xf32, #tpu.memory_space<vmem>>, vector<1x128xf32>
    %c0_2 = arith.constant 0 : index
    %c0_3 = arith.constant 0 : index
    %3 = vector.load %arg0[%c0_2, %c0_3] : memref<64x16xf32, #tpu.memory_space<vmem>>, vector<64x16xf32>
    %4 = arith.truncf %3 : vector<64x16xf32> to vector<64x16xbf16>
    %cst = arith.constant dense<0.000000e+00> : vector<64x128xf32>
    %5 = tpu.matmul %4, %1, %cst {dimension_numbers = #tpu.dot_dimension_numbers<[1], [0], [0], [1], [0, 0, 1, 1], [], []>} : vector<64x16xbf16>, vector<16x128xbf16>, vector<64x128xf32> -> vector<64x128xf32>
    %6 = vector.broadcast %2 : vector<1x128xf32> to vector<64x128xf32>
    %7 = arith.addf %5, %6 : vector<64x128xf32>
    %8 = vector.extract_strided_slice %7 {offsets = [0, 0], sizes = [8, 128], strides = [1, 1]} : vector<64x128xf32> to vector<8x128xf32>
    %9 = vector.extract_strided_slice %7 {offsets = [8, 0], sizes = [8, 128], strides = [1, 1]} : vector<64x128xf32> to vector<8x128xf32>
    %10 = vector.extract_strided_slice %7 {offsets = [16, 0], sizes = [8, 128], strides = [1, 1]} : vector<64x128xf32> to vector<8x128xf32>
    %11 = vector.extract_strided_slice %7 {offsets = [24, 0], sizes = [8, 128], strides = [1, 1]} : vector<64x128xf32> to vector<8x128xf32>
    %12 = vector.extract_strided_slice %7 {offsets = [32, 0], sizes = [8, 128], strides = [1, 1]} : vector<64x128xf32> to vector<8x128xf32>
    %13 = vector.extract_strided_slice %7 {offsets = [40, 0], sizes = [8, 128], strides = [1, 1]} : vector<64x128xf32> to vector<8x128xf32>
    %14 = vector.extract_strided_slice %7 {offsets = [48, 0], sizes = [8, 128], strides = [1, 1]} : vector<64x128xf32> to vector<8x128xf32>
    %15 = vector.extract_strided_slice %7 {offsets = [56, 0], sizes = [8, 128], strides = [1, 1]} : vector<64x128xf32> to vector<8x128xf32>
    %c16 = arith.constant 16 : index
    %c0_4 = arith.constant 0 : index
    %16 = vector.load %arg1[%c16, %c0_4] : memref<184x128xf32, #tpu.memory_space<vmem>>, vector<32x128xf32>
    %17 = arith.truncf %16 : vector<32x128xf32> to vector<32x128xbf16>
    %c56 = arith.constant 56 : index
    %c0_5 = arith.constant 0 : index
    %18 = vector.load %arg1[%c56, %c0_5] : memref<184x128xf32, #tpu.memory_space<vmem>>, vector<32x128xf32>
    %19 = arith.truncf %18 : vector<32x128xf32> to vector<32x128xbf16>
    %c120 = arith.constant 120 : index
    %c0_6 = arith.constant 0 : index
    %20 = vector.load %arg1[%c120, %c0_6] : memref<184x128xf32, #tpu.memory_space<vmem>>, vector<1x128xf32>
    %cst_7 = arith.constant 0.000000e+00 : f32
    %21 = vector.broadcast %cst_7 : f32 to vector<8x32xf32>
    %cst_8 = arith.constant 0.000000e+00 : f32
    %22 = vector.broadcast %cst_8 : f32 to vector<8x32xf32>
    %23 = arith.truncf %21 : vector<8x32xf32> to vector<8x32xbf16>
    %cst_9 = arith.constant dense<0.000000e+00> : vector<8x128xf32>
    %24 = tpu.matmul %23, %17, %cst_9 {dimension_numbers = #tpu.dot_dimension_numbers<[1], [0], [0], [1], [0, 0, 1, 1], [], []>} : vector<8x32xbf16>, vector<32x128xbf16>, vector<8x128xf32> -> vector<8x128xf32>
    %25 = arith.addf %8, %24 : vector<8x128xf32>
    %26 = math.tanh %25 : vector<8x128xf32>
    %cst_10 = arith.constant 5.000000e-01 : f32
    %27 = vector.broadcast %cst_10 : f32 to vector<8x128xf32>
    %28 = arith.mulf %27, %26 : vector<8x128xf32>
    %cst_11 = arith.constant 5.000000e-01 : f32
    %29 = vector.broadcast %cst_11 : f32 to vector<8x128xf32>
    %30 = arith.addf %28, %29 : vector<8x128xf32>
    %31 = vector.extract_strided_slice %30 {offsets = [0, 0], sizes = [8, 32], strides = [1, 1]} : vector<8x128xf32> to vector<8x32xf32>
    %32 = vector.extract_strided_slice %30 {offsets = [0, 32], sizes = [8, 32], strides = [1, 1]} : vector<8x128xf32> to vector<8x32xf32>
    %33 = vector.extract_strided_slice %26 {offsets = [0, 64], sizes = [8, 32], strides = [1, 1]} : vector<8x128xf32> to vector<8x32xf32>
    %34 = vector.extract_strided_slice %30 {offsets = [0, 96], sizes = [8, 32], strides = [1, 1]} : vector<8x128xf32> to vector<8x32xf32>
    %35 = arith.mulf %32, %22 : vector<8x32xf32>
    %36 = arith.mulf %31, %33 : vector<8x32xf32>
    %37 = arith.addf %35, %36 : vector<8x32xf32>
    %38 = math.tanh %37 : vector<8x32xf32>
    %39 = arith.mulf %34, %38 : vector<8x32xf32>
    %40 = arith.truncf %39 : vector<8x32xf32> to vector<8x32xbf16>
    %cst_12 = arith.constant dense<0.000000e+00> : vector<8x128xf32>
    %41 = tpu.matmul %40, %19, %cst_12 {dimension_numbers = #tpu.dot_dimension_numbers<[1], [0], [0], [1], [0, 0, 1, 1], [], []>} : vector<8x32xbf16>, vector<32x128xbf16>, vector<8x128xf32> -> vector<8x128xf32>
    %42 = vector.broadcast %20 : vector<1x128xf32> to vector<8x128xf32>
    %43 = arith.addf %41, %42 : vector<8x128xf32>
    %44 = arith.truncf %39 : vector<8x32xf32> to vector<8x32xbf16>
    %cst_13 = arith.constant dense<0.000000e+00> : vector<8x128xf32>
    %45 = tpu.matmul %44, %17, %cst_13 {dimension_numbers = #tpu.dot_dimension_numbers<[1], [0], [0], [1], [0, 0, 1, 1], [], []>} : vector<8x32xbf16>, vector<32x128xbf16>, vector<8x128xf32> -> vector<8x128xf32>
    %46 = arith.addf %9, %45 : vector<8x128xf32>
    %47 = math.tanh %46 : vector<8x128xf32>
    %cst_14 = arith.constant 5.000000e-01 : f32
    %48 = vector.broadcast %cst_14 : f32 to vector<8x128xf32>
    %49 = arith.mulf %48, %47 : vector<8x128xf32>
    %cst_15 = arith.constant 5.000000e-01 : f32
    %50 = vector.broadcast %cst_15 : f32 to vector<8x128xf32>
    %51 = arith.addf %49, %50 : vector<8x128xf32>
    %52 = vector.extract_strided_slice %51 {offsets = [0, 0], sizes = [8, 32], strides = [1, 1]} : vector<8x128xf32> to vector<8x32xf32>
    %53 = vector.extract_strided_slice %51 {offsets = [0, 32], sizes = [8, 32], strides = [1, 1]} : vector<8x128xf32> to vector<8x32xf32>
    %54 = vector.extract_strided_slice %47 {offsets = [0, 64], sizes = [8, 32], strides = [1, 1]} : vector<8x128xf32> to vector<8x32xf32>
    %55 = vector.extract_strided_slice %51 {offsets = [0, 96], sizes = [8, 32], strides = [1, 1]} : vector<8x128xf32> to vector<8x32xf32>
    %56 = arith.mulf %53, %37 : vector<8x32xf32>
    %57 = arith.mulf %52, %54 : vector<8x32xf32>
    %58 = arith.addf %56, %57 : vector<8x32xf32>
    %59 = math.tanh %58 : vector<8x32xf32>
    %60 = arith.mulf %55, %59 : vector<8x32xf32>
    %61 = arith.truncf %60 : vector<8x32xf32> to vector<8x32xbf16>
    %cst_16 = arith.constant dense<0.000000e+00> : vector<8x128xf32>
    %62 = tpu.matmul %61, %19, %cst_16 {dimension_numbers = #tpu.dot_dimension_numbers<[1], [0], [0], [1], [0, 0, 1, 1], [], []>} : vector<8x32xbf16>, vector<32x128xbf16>, vector<8x128xf32> -> vector<8x128xf32>
    %63 = vector.broadcast %20 : vector<1x128xf32> to vector<8x128xf32>
    %64 = arith.addf %62, %63 : vector<8x128xf32>
    %65 = arith.truncf %60 : vector<8x32xf32> to vector<8x32xbf16>
    %cst_17 = arith.constant dense<0.000000e+00> : vector<8x128xf32>
    %66 = tpu.matmul %65, %17, %cst_17 {dimension_numbers = #tpu.dot_dimension_numbers<[1], [0], [0], [1], [0, 0, 1, 1], [], []>} : vector<8x32xbf16>, vector<32x128xbf16>, vector<8x128xf32> -> vector<8x128xf32>
    %67 = arith.addf %10, %66 : vector<8x128xf32>
    %68 = math.tanh %67 : vector<8x128xf32>
    %cst_18 = arith.constant 5.000000e-01 : f32
    %69 = vector.broadcast %cst_18 : f32 to vector<8x128xf32>
    %70 = arith.mulf %69, %68 : vector<8x128xf32>
    %cst_19 = arith.constant 5.000000e-01 : f32
    %71 = vector.broadcast %cst_19 : f32 to vector<8x128xf32>
    %72 = arith.addf %70, %71 : vector<8x128xf32>
    %73 = vector.extract_strided_slice %72 {offsets = [0, 0], sizes = [8, 32], strides = [1, 1]} : vector<8x128xf32> to vector<8x32xf32>
    %74 = vector.extract_strided_slice %72 {offsets = [0, 32], sizes = [8, 32], strides = [1, 1]} : vector<8x128xf32> to vector<8x32xf32>
    %75 = vector.extract_strided_slice %68 {offsets = [0, 64], sizes = [8, 32], strides = [1, 1]} : vector<8x128xf32> to vector<8x32xf32>
    %76 = vector.extract_strided_slice %72 {offsets = [0, 96], sizes = [8, 32], strides = [1, 1]} : vector<8x128xf32> to vector<8x32xf32>
    %77 = arith.mulf %74, %58 : vector<8x32xf32>
    %78 = arith.mulf %73, %75 : vector<8x32xf32>
    %79 = arith.addf %77, %78 : vector<8x32xf32>
    %80 = math.tanh %79 : vector<8x32xf32>
    %81 = arith.mulf %76, %80 : vector<8x32xf32>
    %82 = arith.truncf %81 : vector<8x32xf32> to vector<8x32xbf16>
    %cst_20 = arith.constant dense<0.000000e+00> : vector<8x128xf32>
    %83 = tpu.matmul %82, %19, %cst_20 {dimension_numbers = #tpu.dot_dimension_numbers<[1], [0], [0], [1], [0, 0, 1, 1], [], []>} : vector<8x32xbf16>, vector<32x128xbf16>, vector<8x128xf32> -> vector<8x128xf32>
    %84 = vector.broadcast %20 : vector<1x128xf32> to vector<8x128xf32>
    %85 = arith.addf %83, %84 : vector<8x128xf32>
    %86 = arith.truncf %81 : vector<8x32xf32> to vector<8x32xbf16>
    %cst_21 = arith.constant dense<0.000000e+00> : vector<8x128xf32>
    %87 = tpu.matmul %86, %17, %cst_21 {dimension_numbers = #tpu.dot_dimension_numbers<[1], [0], [0], [1], [0, 0, 1, 1], [], []>} : vector<8x32xbf16>, vector<32x128xbf16>, vector<8x128xf32> -> vector<8x128xf32>
    %88 = arith.addf %11, %87 : vector<8x128xf32>
    %89 = math.tanh %88 : vector<8x128xf32>
    %cst_22 = arith.constant 5.000000e-01 : f32
    %90 = vector.broadcast %cst_22 : f32 to vector<8x128xf32>
    %91 = arith.mulf %90, %89 : vector<8x128xf32>
    %cst_23 = arith.constant 5.000000e-01 : f32
    %92 = vector.broadcast %cst_23 : f32 to vector<8x128xf32>
    %93 = arith.addf %91, %92 : vector<8x128xf32>
    %94 = vector.extract_strided_slice %93 {offsets = [0, 0], sizes = [8, 32], strides = [1, 1]} : vector<8x128xf32> to vector<8x32xf32>
    %95 = vector.extract_strided_slice %93 {offsets = [0, 32], sizes = [8, 32], strides = [1, 1]} : vector<8x128xf32> to vector<8x32xf32>
    %96 = vector.extract_strided_slice %89 {offsets = [0, 64], sizes = [8, 32], strides = [1, 1]} : vector<8x128xf32> to vector<8x32xf32>
    %97 = vector.extract_strided_slice %93 {offsets = [0, 96], sizes = [8, 32], strides = [1, 1]} : vector<8x128xf32> to vector<8x32xf32>
    %98 = arith.mulf %95, %79 : vector<8x32xf32>
    %99 = arith.mulf %94, %96 : vector<8x32xf32>
    %100 = arith.addf %98, %99 : vector<8x32xf32>
    %101 = math.tanh %100 : vector<8x32xf32>
    %102 = arith.mulf %97, %101 : vector<8x32xf32>
    %103 = arith.truncf %102 : vector<8x32xf32> to vector<8x32xbf16>
    %cst_24 = arith.constant dense<0.000000e+00> : vector<8x128xf32>
    %104 = tpu.matmul %103, %19, %cst_24 {dimension_numbers = #tpu.dot_dimension_numbers<[1], [0], [0], [1], [0, 0, 1, 1], [], []>} : vector<8x32xbf16>, vector<32x128xbf16>, vector<8x128xf32> -> vector<8x128xf32>
    %105 = vector.broadcast %20 : vector<1x128xf32> to vector<8x128xf32>
    %106 = arith.addf %104, %105 : vector<8x128xf32>
    %107 = arith.truncf %102 : vector<8x32xf32> to vector<8x32xbf16>
    %cst_25 = arith.constant dense<0.000000e+00> : vector<8x128xf32>
    %108 = tpu.matmul %107, %17, %cst_25 {dimension_numbers = #tpu.dot_dimension_numbers<[1], [0], [0], [1], [0, 0, 1, 1], [], []>} : vector<8x32xbf16>, vector<32x128xbf16>, vector<8x128xf32> -> vector<8x128xf32>
    %109 = arith.addf %12, %108 : vector<8x128xf32>
    %110 = math.tanh %109 : vector<8x128xf32>
    %cst_26 = arith.constant 5.000000e-01 : f32
    %111 = vector.broadcast %cst_26 : f32 to vector<8x128xf32>
    %112 = arith.mulf %111, %110 : vector<8x128xf32>
    %cst_27 = arith.constant 5.000000e-01 : f32
    %113 = vector.broadcast %cst_27 : f32 to vector<8x128xf32>
    %114 = arith.addf %112, %113 : vector<8x128xf32>
    %115 = vector.extract_strided_slice %114 {offsets = [0, 0], sizes = [8, 32], strides = [1, 1]} : vector<8x128xf32> to vector<8x32xf32>
    %116 = vector.extract_strided_slice %114 {offsets = [0, 32], sizes = [8, 32], strides = [1, 1]} : vector<8x128xf32> to vector<8x32xf32>
    %117 = vector.extract_strided_slice %110 {offsets = [0, 64], sizes = [8, 32], strides = [1, 1]} : vector<8x128xf32> to vector<8x32xf32>
    %118 = vector.extract_strided_slice %114 {offsets = [0, 96], sizes = [8, 32], strides = [1, 1]} : vector<8x128xf32> to vector<8x32xf32>
    %119 = arith.mulf %116, %100 : vector<8x32xf32>
    %120 = arith.mulf %115, %117 : vector<8x32xf32>
    %121 = arith.addf %119, %120 : vector<8x32xf32>
    %122 = math.tanh %121 : vector<8x32xf32>
    %123 = arith.mulf %118, %122 : vector<8x32xf32>
    %124 = arith.truncf %123 : vector<8x32xf32> to vector<8x32xbf16>
    %cst_28 = arith.constant dense<0.000000e+00> : vector<8x128xf32>
    %125 = tpu.matmul %124, %19, %cst_28 {dimension_numbers = #tpu.dot_dimension_numbers<[1], [0], [0], [1], [0, 0, 1, 1], [], []>} : vector<8x32xbf16>, vector<32x128xbf16>, vector<8x128xf32> -> vector<8x128xf32>
    %126 = vector.broadcast %20 : vector<1x128xf32> to vector<8x128xf32>
    %127 = arith.addf %125, %126 : vector<8x128xf32>
    %128 = arith.truncf %123 : vector<8x32xf32> to vector<8x32xbf16>
    %cst_29 = arith.constant dense<0.000000e+00> : vector<8x128xf32>
    %129 = tpu.matmul %128, %17, %cst_29 {dimension_numbers = #tpu.dot_dimension_numbers<[1], [0], [0], [1], [0, 0, 1, 1], [], []>} : vector<8x32xbf16>, vector<32x128xbf16>, vector<8x128xf32> -> vector<8x128xf32>
    %130 = arith.addf %13, %129 : vector<8x128xf32>
    %131 = math.tanh %130 : vector<8x128xf32>
    %cst_30 = arith.constant 5.000000e-01 : f32
    %132 = vector.broadcast %cst_30 : f32 to vector<8x128xf32>
    %133 = arith.mulf %132, %131 : vector<8x128xf32>
    %cst_31 = arith.constant 5.000000e-01 : f32
    %134 = vector.broadcast %cst_31 : f32 to vector<8x128xf32>
    %135 = arith.addf %133, %134 : vector<8x128xf32>
    %136 = vector.extract_strided_slice %135 {offsets = [0, 0], sizes = [8, 32], strides = [1, 1]} : vector<8x128xf32> to vector<8x32xf32>
    %137 = vector.extract_strided_slice %135 {offsets = [0, 32], sizes = [8, 32], strides = [1, 1]} : vector<8x128xf32> to vector<8x32xf32>
    %138 = vector.extract_strided_slice %131 {offsets = [0, 64], sizes = [8, 32], strides = [1, 1]} : vector<8x128xf32> to vector<8x32xf32>
    %139 = vector.extract_strided_slice %135 {offsets = [0, 96], sizes = [8, 32], strides = [1, 1]} : vector<8x128xf32> to vector<8x32xf32>
    %140 = arith.mulf %137, %121 : vector<8x32xf32>
    %141 = arith.mulf %136, %138 : vector<8x32xf32>
    %142 = arith.addf %140, %141 : vector<8x32xf32>
    %143 = math.tanh %142 : vector<8x32xf32>
    %144 = arith.mulf %139, %143 : vector<8x32xf32>
    %145 = arith.truncf %144 : vector<8x32xf32> to vector<8x32xbf16>
    %cst_32 = arith.constant dense<0.000000e+00> : vector<8x128xf32>
    %146 = tpu.matmul %145, %19, %cst_32 {dimension_numbers = #tpu.dot_dimension_numbers<[1], [0], [0], [1], [0, 0, 1, 1], [], []>} : vector<8x32xbf16>, vector<32x128xbf16>, vector<8x128xf32> -> vector<8x128xf32>
    %147 = vector.broadcast %20 : vector<1x128xf32> to vector<8x128xf32>
    %148 = arith.addf %146, %147 : vector<8x128xf32>
    %149 = arith.truncf %144 : vector<8x32xf32> to vector<8x32xbf16>
    %cst_33 = arith.constant dense<0.000000e+00> : vector<8x128xf32>
    %150 = tpu.matmul %149, %17, %cst_33 {dimension_numbers = #tpu.dot_dimension_numbers<[1], [0], [0], [1], [0, 0, 1, 1], [], []>} : vector<8x32xbf16>, vector<32x128xbf16>, vector<8x128xf32> -> vector<8x128xf32>
    %151 = arith.addf %14, %150 : vector<8x128xf32>
    %152 = math.tanh %151 : vector<8x128xf32>
    %cst_34 = arith.constant 5.000000e-01 : f32
    %153 = vector.broadcast %cst_34 : f32 to vector<8x128xf32>
    %154 = arith.mulf %153, %152 : vector<8x128xf32>
    %cst_35 = arith.constant 5.000000e-01 : f32
    %155 = vector.broadcast %cst_35 : f32 to vector<8x128xf32>
    %156 = arith.addf %154, %155 : vector<8x128xf32>
    %157 = vector.extract_strided_slice %156 {offsets = [0, 0], sizes = [8, 32], strides = [1, 1]} : vector<8x128xf32> to vector<8x32xf32>
    %158 = vector.extract_strided_slice %156 {offsets = [0, 32], sizes = [8, 32], strides = [1, 1]} : vector<8x128xf32> to vector<8x32xf32>
    %159 = vector.extract_strided_slice %152 {offsets = [0, 64], sizes = [8, 32], strides = [1, 1]} : vector<8x128xf32> to vector<8x32xf32>
    %160 = vector.extract_strided_slice %156 {offsets = [0, 96], sizes = [8, 32], strides = [1, 1]} : vector<8x128xf32> to vector<8x32xf32>
    %161 = arith.mulf %158, %142 : vector<8x32xf32>
    %162 = arith.mulf %157, %159 : vector<8x32xf32>
    %163 = arith.addf %161, %162 : vector<8x32xf32>
    %164 = math.tanh %163 : vector<8x32xf32>
    %165 = arith.mulf %160, %164 : vector<8x32xf32>
    %166 = arith.truncf %165 : vector<8x32xf32> to vector<8x32xbf16>
    %cst_36 = arith.constant dense<0.000000e+00> : vector<8x128xf32>
    %167 = tpu.matmul %166, %19, %cst_36 {dimension_numbers = #tpu.dot_dimension_numbers<[1], [0], [0], [1], [0, 0, 1, 1], [], []>} : vector<8x32xbf16>, vector<32x128xbf16>, vector<8x128xf32> -> vector<8x128xf32>
    %168 = vector.broadcast %20 : vector<1x128xf32> to vector<8x128xf32>
    %169 = arith.addf %167, %168 : vector<8x128xf32>
    %170 = arith.truncf %165 : vector<8x32xf32> to vector<8x32xbf16>
    %cst_37 = arith.constant dense<0.000000e+00> : vector<8x128xf32>
    %171 = tpu.matmul %170, %17, %cst_37 {dimension_numbers = #tpu.dot_dimension_numbers<[1], [0], [0], [1], [0, 0, 1, 1], [], []>} : vector<8x32xbf16>, vector<32x128xbf16>, vector<8x128xf32> -> vector<8x128xf32>
    %172 = arith.addf %15, %171 : vector<8x128xf32>
    %173 = math.tanh %172 : vector<8x128xf32>
    %cst_38 = arith.constant 5.000000e-01 : f32
    %174 = vector.broadcast %cst_38 : f32 to vector<8x128xf32>
    %175 = arith.mulf %174, %173 : vector<8x128xf32>
    %cst_39 = arith.constant 5.000000e-01 : f32
    %176 = vector.broadcast %cst_39 : f32 to vector<8x128xf32>
    %177 = arith.addf %175, %176 : vector<8x128xf32>
    %178 = vector.extract_strided_slice %177 {offsets = [0, 0], sizes = [8, 32], strides = [1, 1]} : vector<8x128xf32> to vector<8x32xf32>
    %179 = vector.extract_strided_slice %177 {offsets = [0, 32], sizes = [8, 32], strides = [1, 1]} : vector<8x128xf32> to vector<8x32xf32>
    %180 = vector.extract_strided_slice %173 {offsets = [0, 64], sizes = [8, 32], strides = [1, 1]} : vector<8x128xf32> to vector<8x32xf32>
    %181 = vector.extract_strided_slice %177 {offsets = [0, 96], sizes = [8, 32], strides = [1, 1]} : vector<8x128xf32> to vector<8x32xf32>
    %182 = arith.mulf %179, %163 : vector<8x32xf32>
    %183 = arith.mulf %178, %180 : vector<8x32xf32>
    %184 = arith.addf %182, %183 : vector<8x32xf32>
    %185 = math.tanh %184 : vector<8x32xf32>
    %186 = arith.mulf %181, %185 : vector<8x32xf32>
    %187 = arith.truncf %186 : vector<8x32xf32> to vector<8x32xbf16>
    %cst_40 = arith.constant dense<0.000000e+00> : vector<8x128xf32>
    %188 = tpu.matmul %187, %19, %cst_40 {dimension_numbers = #tpu.dot_dimension_numbers<[1], [0], [0], [1], [0, 0, 1, 1], [], []>} : vector<8x32xbf16>, vector<32x128xbf16>, vector<8x128xf32> -> vector<8x128xf32>
    %189 = vector.broadcast %20 : vector<1x128xf32> to vector<8x128xf32>
    %190 = arith.addf %188, %189 : vector<8x128xf32>
    %c88 = arith.constant 88 : index
    %c0_41 = arith.constant 0 : index
    %191 = vector.load %arg1[%c88, %c0_41] : memref<184x128xf32, #tpu.memory_space<vmem>>, vector<32x128xf32>
    %192 = arith.truncf %191 : vector<32x128xf32> to vector<32x128xbf16>
    %cst_42 = arith.constant 0.000000e+00 : f32
    %193 = vector.broadcast %cst_42 : f32 to vector<8x32xf32>
    %cst_43 = arith.constant 0.000000e+00 : f32
    %194 = vector.broadcast %cst_43 : f32 to vector<8x32xf32>
    %195 = arith.truncf %193 : vector<8x32xf32> to vector<8x32xbf16>
    %cst_44 = arith.constant dense<0.000000e+00> : vector<8x128xf32>
    %196 = tpu.matmul %195, %192, %cst_44 {dimension_numbers = #tpu.dot_dimension_numbers<[1], [0], [0], [1], [0, 0, 1, 1], [], []>} : vector<8x32xbf16>, vector<32x128xbf16>, vector<8x128xf32> -> vector<8x128xf32>
    %197 = arith.addf %43, %196 : vector<8x128xf32>
    %198 = math.tanh %197 : vector<8x128xf32>
    %cst_45 = arith.constant 5.000000e-01 : f32
    %199 = vector.broadcast %cst_45 : f32 to vector<8x128xf32>
    %200 = arith.mulf %199, %198 : vector<8x128xf32>
    %cst_46 = arith.constant 5.000000e-01 : f32
    %201 = vector.broadcast %cst_46 : f32 to vector<8x128xf32>
    %202 = arith.addf %200, %201 : vector<8x128xf32>
    %203 = vector.extract_strided_slice %202 {offsets = [0, 0], sizes = [8, 32], strides = [1, 1]} : vector<8x128xf32> to vector<8x32xf32>
    %204 = vector.extract_strided_slice %202 {offsets = [0, 32], sizes = [8, 32], strides = [1, 1]} : vector<8x128xf32> to vector<8x32xf32>
    %205 = vector.extract_strided_slice %198 {offsets = [0, 64], sizes = [8, 32], strides = [1, 1]} : vector<8x128xf32> to vector<8x32xf32>
    %206 = vector.extract_strided_slice %202 {offsets = [0, 96], sizes = [8, 32], strides = [1, 1]} : vector<8x128xf32> to vector<8x32xf32>
    %207 = arith.mulf %204, %194 : vector<8x32xf32>
    %208 = arith.mulf %203, %205 : vector<8x32xf32>
    %209 = arith.addf %207, %208 : vector<8x32xf32>
    %210 = math.tanh %209 : vector<8x32xf32>
    %211 = arith.mulf %206, %210 : vector<8x32xf32>
    %212 = arith.truncf %211 : vector<8x32xf32> to vector<8x32xbf16>
    %cst_47 = arith.constant dense<0.000000e+00> : vector<8x128xf32>
    %213 = tpu.matmul %212, %192, %cst_47 {dimension_numbers = #tpu.dot_dimension_numbers<[1], [0], [0], [1], [0, 0, 1, 1], [], []>} : vector<8x32xbf16>, vector<32x128xbf16>, vector<8x128xf32> -> vector<8x128xf32>
    %214 = arith.addf %64, %213 : vector<8x128xf32>
    %215 = math.tanh %214 : vector<8x128xf32>
    %cst_48 = arith.constant 5.000000e-01 : f32
    %216 = vector.broadcast %cst_48 : f32 to vector<8x128xf32>
    %217 = arith.mulf %216, %215 : vector<8x128xf32>
    %cst_49 = arith.constant 5.000000e-01 : f32
    %218 = vector.broadcast %cst_49 : f32 to vector<8x128xf32>
    %219 = arith.addf %217, %218 : vector<8x128xf32>
    %220 = vector.extract_strided_slice %219 {offsets = [0, 0], sizes = [8, 32], strides = [1, 1]} : vector<8x128xf32> to vector<8x32xf32>
    %221 = vector.extract_strided_slice %219 {offsets = [0, 32], sizes = [8, 32], strides = [1, 1]} : vector<8x128xf32> to vector<8x32xf32>
    %222 = vector.extract_strided_slice %215 {offsets = [0, 64], sizes = [8, 32], strides = [1, 1]} : vector<8x128xf32> to vector<8x32xf32>
    %223 = vector.extract_strided_slice %219 {offsets = [0, 96], sizes = [8, 32], strides = [1, 1]} : vector<8x128xf32> to vector<8x32xf32>
    %224 = arith.mulf %221, %209 : vector<8x32xf32>
    %225 = arith.mulf %220, %222 : vector<8x32xf32>
    %226 = arith.addf %224, %225 : vector<8x32xf32>
    %227 = math.tanh %226 : vector<8x32xf32>
    %228 = arith.mulf %223, %227 : vector<8x32xf32>
    %229 = arith.truncf %228 : vector<8x32xf32> to vector<8x32xbf16>
    %cst_50 = arith.constant dense<0.000000e+00> : vector<8x128xf32>
    %230 = tpu.matmul %229, %192, %cst_50 {dimension_numbers = #tpu.dot_dimension_numbers<[1], [0], [0], [1], [0, 0, 1, 1], [], []>} : vector<8x32xbf16>, vector<32x128xbf16>, vector<8x128xf32> -> vector<8x128xf32>
    %231 = arith.addf %85, %230 : vector<8x128xf32>
    %232 = math.tanh %231 : vector<8x128xf32>
    %cst_51 = arith.constant 5.000000e-01 : f32
    %233 = vector.broadcast %cst_51 : f32 to vector<8x128xf32>
    %234 = arith.mulf %233, %232 : vector<8x128xf32>
    %cst_52 = arith.constant 5.000000e-01 : f32
    %235 = vector.broadcast %cst_52 : f32 to vector<8x128xf32>
    %236 = arith.addf %234, %235 : vector<8x128xf32>
    %237 = vector.extract_strided_slice %236 {offsets = [0, 0], sizes = [8, 32], strides = [1, 1]} : vector<8x128xf32> to vector<8x32xf32>
    %238 = vector.extract_strided_slice %236 {offsets = [0, 32], sizes = [8, 32], strides = [1, 1]} : vector<8x128xf32> to vector<8x32xf32>
    %239 = vector.extract_strided_slice %232 {offsets = [0, 64], sizes = [8, 32], strides = [1, 1]} : vector<8x128xf32> to vector<8x32xf32>
    %240 = vector.extract_strided_slice %236 {offsets = [0, 96], sizes = [8, 32], strides = [1, 1]} : vector<8x128xf32> to vector<8x32xf32>
    %241 = arith.mulf %238, %226 : vector<8x32xf32>
    %242 = arith.mulf %237, %239 : vector<8x32xf32>
    %243 = arith.addf %241, %242 : vector<8x32xf32>
    %244 = math.tanh %243 : vector<8x32xf32>
    %245 = arith.mulf %240, %244 : vector<8x32xf32>
    %246 = arith.truncf %245 : vector<8x32xf32> to vector<8x32xbf16>
    %cst_53 = arith.constant dense<0.000000e+00> : vector<8x128xf32>
    %247 = tpu.matmul %246, %192, %cst_53 {dimension_numbers = #tpu.dot_dimension_numbers<[1], [0], [0], [1], [0, 0, 1, 1], [], []>} : vector<8x32xbf16>, vector<32x128xbf16>, vector<8x128xf32> -> vector<8x128xf32>
    %248 = arith.addf %106, %247 : vector<8x128xf32>
    %249 = math.tanh %248 : vector<8x128xf32>
    %cst_54 = arith.constant 5.000000e-01 : f32
    %250 = vector.broadcast %cst_54 : f32 to vector<8x128xf32>
    %251 = arith.mulf %250, %249 : vector<8x128xf32>
    %cst_55 = arith.constant 5.000000e-01 : f32
    %252 = vector.broadcast %cst_55 : f32 to vector<8x128xf32>
    %253 = arith.addf %251, %252 : vector<8x128xf32>
    %254 = vector.extract_strided_slice %253 {offsets = [0, 0], sizes = [8, 32], strides = [1, 1]} : vector<8x128xf32> to vector<8x32xf32>
    %255 = vector.extract_strided_slice %253 {offsets = [0, 32], sizes = [8, 32], strides = [1, 1]} : vector<8x128xf32> to vector<8x32xf32>
    %256 = vector.extract_strided_slice %249 {offsets = [0, 64], sizes = [8, 32], strides = [1, 1]} : vector<8x128xf32> to vector<8x32xf32>
    %257 = vector.extract_strided_slice %253 {offsets = [0, 96], sizes = [8, 32], strides = [1, 1]} : vector<8x128xf32> to vector<8x32xf32>
    %258 = arith.mulf %255, %243 : vector<8x32xf32>
    %259 = arith.mulf %254, %256 : vector<8x32xf32>
    %260 = arith.addf %258, %259 : vector<8x32xf32>
    %261 = math.tanh %260 : vector<8x32xf32>
    %262 = arith.mulf %257, %261 : vector<8x32xf32>
    %263 = arith.truncf %262 : vector<8x32xf32> to vector<8x32xbf16>
    %cst_56 = arith.constant dense<0.000000e+00> : vector<8x128xf32>
    %264 = tpu.matmul %263, %192, %cst_56 {dimension_numbers = #tpu.dot_dimension_numbers<[1], [0], [0], [1], [0, 0, 1, 1], [], []>} : vector<8x32xbf16>, vector<32x128xbf16>, vector<8x128xf32> -> vector<8x128xf32>
    %265 = arith.addf %127, %264 : vector<8x128xf32>
    %266 = math.tanh %265 : vector<8x128xf32>
    %cst_57 = arith.constant 5.000000e-01 : f32
    %267 = vector.broadcast %cst_57 : f32 to vector<8x128xf32>
    %268 = arith.mulf %267, %266 : vector<8x128xf32>
    %cst_58 = arith.constant 5.000000e-01 : f32
    %269 = vector.broadcast %cst_58 : f32 to vector<8x128xf32>
    %270 = arith.addf %268, %269 : vector<8x128xf32>
    %271 = vector.extract_strided_slice %270 {offsets = [0, 0], sizes = [8, 32], strides = [1, 1]} : vector<8x128xf32> to vector<8x32xf32>
    %272 = vector.extract_strided_slice %270 {offsets = [0, 32], sizes = [8, 32], strides = [1, 1]} : vector<8x128xf32> to vector<8x32xf32>
    %273 = vector.extract_strided_slice %266 {offsets = [0, 64], sizes = [8, 32], strides = [1, 1]} : vector<8x128xf32> to vector<8x32xf32>
    %274 = vector.extract_strided_slice %270 {offsets = [0, 96], sizes = [8, 32], strides = [1, 1]} : vector<8x128xf32> to vector<8x32xf32>
    %275 = arith.mulf %272, %260 : vector<8x32xf32>
    %276 = arith.mulf %271, %273 : vector<8x32xf32>
    %277 = arith.addf %275, %276 : vector<8x32xf32>
    %278 = math.tanh %277 : vector<8x32xf32>
    %279 = arith.mulf %274, %278 : vector<8x32xf32>
    %280 = arith.truncf %279 : vector<8x32xf32> to vector<8x32xbf16>
    %cst_59 = arith.constant dense<0.000000e+00> : vector<8x128xf32>
    %281 = tpu.matmul %280, %192, %cst_59 {dimension_numbers = #tpu.dot_dimension_numbers<[1], [0], [0], [1], [0, 0, 1, 1], [], []>} : vector<8x32xbf16>, vector<32x128xbf16>, vector<8x128xf32> -> vector<8x128xf32>
    %282 = arith.addf %148, %281 : vector<8x128xf32>
    %283 = math.tanh %282 : vector<8x128xf32>
    %cst_60 = arith.constant 5.000000e-01 : f32
    %284 = vector.broadcast %cst_60 : f32 to vector<8x128xf32>
    %285 = arith.mulf %284, %283 : vector<8x128xf32>
    %cst_61 = arith.constant 5.000000e-01 : f32
    %286 = vector.broadcast %cst_61 : f32 to vector<8x128xf32>
    %287 = arith.addf %285, %286 : vector<8x128xf32>
    %288 = vector.extract_strided_slice %287 {offsets = [0, 0], sizes = [8, 32], strides = [1, 1]} : vector<8x128xf32> to vector<8x32xf32>
    %289 = vector.extract_strided_slice %287 {offsets = [0, 32], sizes = [8, 32], strides = [1, 1]} : vector<8x128xf32> to vector<8x32xf32>
    %290 = vector.extract_strided_slice %283 {offsets = [0, 64], sizes = [8, 32], strides = [1, 1]} : vector<8x128xf32> to vector<8x32xf32>
    %291 = vector.extract_strided_slice %287 {offsets = [0, 96], sizes = [8, 32], strides = [1, 1]} : vector<8x128xf32> to vector<8x32xf32>
    %292 = arith.mulf %289, %277 : vector<8x32xf32>
    %293 = arith.mulf %288, %290 : vector<8x32xf32>
    %294 = arith.addf %292, %293 : vector<8x32xf32>
    %295 = math.tanh %294 : vector<8x32xf32>
    %296 = arith.mulf %291, %295 : vector<8x32xf32>
    %297 = arith.truncf %296 : vector<8x32xf32> to vector<8x32xbf16>
    %cst_62 = arith.constant dense<0.000000e+00> : vector<8x128xf32>
    %298 = tpu.matmul %297, %192, %cst_62 {dimension_numbers = #tpu.dot_dimension_numbers<[1], [0], [0], [1], [0, 0, 1, 1], [], []>} : vector<8x32xbf16>, vector<32x128xbf16>, vector<8x128xf32> -> vector<8x128xf32>
    %299 = arith.addf %169, %298 : vector<8x128xf32>
    %300 = math.tanh %299 : vector<8x128xf32>
    %cst_63 = arith.constant 5.000000e-01 : f32
    %301 = vector.broadcast %cst_63 : f32 to vector<8x128xf32>
    %302 = arith.mulf %301, %300 : vector<8x128xf32>
    %cst_64 = arith.constant 5.000000e-01 : f32
    %303 = vector.broadcast %cst_64 : f32 to vector<8x128xf32>
    %304 = arith.addf %302, %303 : vector<8x128xf32>
    %305 = vector.extract_strided_slice %304 {offsets = [0, 0], sizes = [8, 32], strides = [1, 1]} : vector<8x128xf32> to vector<8x32xf32>
    %306 = vector.extract_strided_slice %304 {offsets = [0, 32], sizes = [8, 32], strides = [1, 1]} : vector<8x128xf32> to vector<8x32xf32>
    %307 = vector.extract_strided_slice %300 {offsets = [0, 64], sizes = [8, 32], strides = [1, 1]} : vector<8x128xf32> to vector<8x32xf32>
    %308 = vector.extract_strided_slice %304 {offsets = [0, 96], sizes = [8, 32], strides = [1, 1]} : vector<8x128xf32> to vector<8x32xf32>
    %309 = arith.mulf %306, %294 : vector<8x32xf32>
    %310 = arith.mulf %305, %307 : vector<8x32xf32>
    %311 = arith.addf %309, %310 : vector<8x32xf32>
    %312 = math.tanh %311 : vector<8x32xf32>
    %313 = arith.mulf %308, %312 : vector<8x32xf32>
    %314 = arith.truncf %313 : vector<8x32xf32> to vector<8x32xbf16>
    %cst_65 = arith.constant dense<0.000000e+00> : vector<8x128xf32>
    %315 = tpu.matmul %314, %192, %cst_65 {dimension_numbers = #tpu.dot_dimension_numbers<[1], [0], [0], [1], [0, 0, 1, 1], [], []>} : vector<8x32xbf16>, vector<32x128xbf16>, vector<8x128xf32> -> vector<8x128xf32>
    %316 = arith.addf %190, %315 : vector<8x128xf32>
    %317 = math.tanh %316 : vector<8x128xf32>
    %cst_66 = arith.constant 5.000000e-01 : f32
    %318 = vector.broadcast %cst_66 : f32 to vector<8x128xf32>
    %319 = arith.mulf %318, %317 : vector<8x128xf32>
    %cst_67 = arith.constant 5.000000e-01 : f32
    %320 = vector.broadcast %cst_67 : f32 to vector<8x128xf32>
    %321 = arith.addf %319, %320 : vector<8x128xf32>
    %322 = vector.extract_strided_slice %321 {offsets = [0, 0], sizes = [8, 32], strides = [1, 1]} : vector<8x128xf32> to vector<8x32xf32>
    %323 = vector.extract_strided_slice %321 {offsets = [0, 32], sizes = [8, 32], strides = [1, 1]} : vector<8x128xf32> to vector<8x32xf32>
    %324 = vector.extract_strided_slice %317 {offsets = [0, 64], sizes = [8, 32], strides = [1, 1]} : vector<8x128xf32> to vector<8x32xf32>
    %325 = vector.extract_strided_slice %321 {offsets = [0, 96], sizes = [8, 32], strides = [1, 1]} : vector<8x128xf32> to vector<8x32xf32>
    %326 = arith.mulf %323, %311 : vector<8x32xf32>
    %327 = arith.mulf %322, %324 : vector<8x32xf32>
    %328 = arith.addf %326, %327 : vector<8x32xf32>
    %329 = math.tanh %328 : vector<8x32xf32>
    %330 = arith.mulf %325, %329 : vector<8x32xf32>
    %c128 = arith.constant 128 : index
    %c0_68 = arith.constant 0 : index
    %331 = vector.load %arg1[%c128, %c0_68] : memref<184x128xf32, #tpu.memory_space<vmem>>, vector<32x16xf32>
    %332 = arith.truncf %331 : vector<32x16xf32> to vector<32x16xbf16>
    %c160 = arith.constant 160 : index
    %c0_69 = arith.constant 0 : index
    %333 = vector.load %arg1[%c160, %c0_69] : memref<184x128xf32, #tpu.memory_space<vmem>>, vector<1x16xf32>
    %c168 = arith.constant 168 : index
    %c0_70 = arith.constant 0 : index
    %334 = vector.load %arg1[%c168, %c0_70] : memref<184x128xf32, #tpu.memory_space<vmem>>, vector<1x16xf32>
    %c176 = arith.constant 176 : index
    %c0_71 = arith.constant 0 : index
    %335 = vector.load %arg1[%c176, %c0_71] : memref<184x128xf32, #tpu.memory_space<vmem>>, vector<1x1xf32>
    %336 = arith.truncf %330 : vector<8x32xf32> to vector<8x32xbf16>
    %cst_72 = arith.constant dense<0.000000e+00> : vector<8x16xf32>
    %337 = tpu.matmul %336, %332, %cst_72 {dimension_numbers = #tpu.dot_dimension_numbers<[1], [0], [0], [1], [0, 0, 1, 1], [], []>} : vector<8x32xbf16>, vector<32x16xbf16>, vector<8x16xf32> -> vector<8x16xf32>
    %338 = vector.broadcast %333 : vector<1x16xf32> to vector<8x16xf32>
    %339 = arith.addf %337, %338 : vector<8x16xf32>
    %cst_73 = arith.constant 0.000000e+00 : f32
    %340 = vector.broadcast %cst_73 : f32 to vector<8x16xf32>
    %341 = arith.maximumf %339, %340 : vector<8x16xf32>
    %342 = vector.broadcast %334 : vector<1x16xf32> to vector<8x16xf32>
    %343 = arith.mulf %341, %342 : vector<8x16xf32>
    %cst_74 = arith.constant dense<0.000000e+00> : vector<8xf32>
    %344 = vector.multi_reduction <add>, %343, %cst_74 [1] : vector<8x16xf32> to vector<8xf32>
    %345 = vector.shape_cast %344 : vector<8xf32> to vector<8x1xf32>
    %346 = vector.broadcast %335 : vector<1x1xf32> to vector<8x1xf32>
    %347 = arith.addf %345, %346 : vector<8x1xf32>
    %c0_75 = arith.constant 0 : index
    %c0_76 = arith.constant 0 : index
    %348 = vector.load %arg2[%c0_75, %c0_76] : memref<8x1xf32, #tpu.memory_space<vmem>>, vector<8x1xf32>
    tpu.vector_store %arg2[%c0_75, %c0_76], %347 {strides = array<i32>} : memref<8x1xf32, #tpu.memory_space<vmem>>, vector<8x1xf32>,
    return
  }
}

</mosaic_0001>

<llo_original>
// kernel: model_forward.1
$region0: #{model_forward.1}
  #allocation0 [shape = 'u32[]', space=smem, size = 0x4, offset = 0x4, fixed_abs, tag = 'smem constant byte address 0x4 - core index']
  #allocation1 [shape = 'u32[144,128]{1,0:T(1,128)}', space=vmem, size = 0x12000, scoped, tag = 'internal scratch']
  %s0 = inlined_call_operand.vmem [shape: f32[64,16], index: 0, kind: input, shape index: {}]
  %s1 = inlined_call_operand.vmem [shape: f32[184,128], index: 1, kind: input, shape index: {}]
  %s2 = inlined_call_operand.vmem [shape: f32[8,1], index: 2, kind: output, shape index: {}]
  %s3 = sld [smem:[#allocation0]]
  $region18: #{model_forward.1} parent=0
    _
  %s5 = ssub.s32 1, %s3
  %s6 = scalar_select 0, %s5, %s3
  // Predicated region
  $region2: #{model_forward.1} parent=0 // pred_check
    _
  $region3: #{model_forward.1} parent=0 // pred_check_branch
    %8 = sbr.rel (0) target = $region5
  $region4: #{model_forward.1} parent=0 // pred_region
    _
  $region5: #{model_forward.1} parent=0 // pred_fallthru
    _
  // Predicated region
  $region6: #{model_forward.1} parent=0 // pred_check
    _
  $region7: #{model_forward.1} parent=0 // pred_check_branch
    %10 = sbr.rel (0) target = $region9
  $region8: #{model_forward.1} parent=0 // pred_region
    _
  $region9: #{model_forward.1} parent=0 // pred_fallthru
    _
  %v12 = vld [vmem:[%s1] sm:$0xff]
  %v13 = vld [vmem:[%s1 + $0x8] sm:$0xff]
  %v14 = vpack.c.bf16 %v13, %v12
  %v15 = vld [vmem:[%s1 + $0x30] sm:$0x1]
  %v16 = vld [vmem:[%s0] sm:$0xff]
  %v17 = vld [vmem:[%s0 + $0x8] sm:$0xff]
  %v18 = vld [vmem:[%s0 + $0x10] sm:$0xff]
  %v19 = vld [vmem:[%s0 + $0x18] sm:$0xff]
  %v20 = vld [vmem:[%s0 + $0x20] sm:$0xff]
  %v21 = vld [vmem:[%s0 + $0x28] sm:$0xff]
  %v22 = vld [vmem:[%s0 + $0x30] sm:$0xff]
  %v23 = vld [vmem:[%s0 + $0x38] sm:$0xff]
  %v24 = vpack.c.bf16 %v17, %v16
  %v25 = vpack.c.bf16 %v19, %v18
  %v26 = vpack.c.bf16 %v21, %v20
  %v27 = vpack.c.bf16 %v23, %v22
  %v28 = vlaneseq
  %v29 = vshrl.u32 %v28, 7
  %v30 = vsub.s32 0, %v29
  %v31 = vrot.slane %v15, %v30
  %vm32 = vcmask 130048
  %v34 = vsel %vm32, %v24, 0
  %v37 = vsel %vm32, %v25, 0
  %v40 = vsel %vm32, %v26, 0
  %v43 = vsel %vm32, %v27, 0
  %45 = vmatprep.subr.bf16.mxu0 0
  %46 = vmatpush1.bf16.msra.mxu0 %v14
  %47 = vmatprep.subr.bf16.mxu0 0
  %48 = vmatpush1.bf16.msra.mxu0 0
  %49 = vmatprep.subr.bf16.mxu0 0
  %50 = vmatpush1.bf16.msra.mxu0 0
  %51 = vmatprep.subr.bf16.mxu0 0
  %52 = vmatpush1.bf16.msra.mxu0 0
  %53 = vmatprep.subr.bf16.mxu0 0
  %54 = vmatpush1.bf16.msra.mxu0 0
  %55 = vmatprep.subr.bf16.mxu0 0
  %56 = vmatpush1.bf16.msra.mxu0 0
  %57 = vmatprep.subr.bf16.mxu0 0
  %58 = vmatpush1.bf16.msra.mxu0 0
  %59 = vmatprep.subr.bf16.mxu0 0
  %60 = vmatpush1.bf16.msra.mxu0 0
  %61 = vmatprep.subr.bf16.mxu0 0
  %62 = vmatpush1.bf16.msra.mxu0 0
  %63 = vmatprep.subr.bf16.mxu0 0
  %64 = vmatpush1.bf16.msra.mxu0 0
  %65 = vmatprep.subr.bf16.mxu0 0
  %66 = vmatpush1.bf16.msra.mxu0 0
  %67 = vmatprep.subr.bf16.mxu0 0
  %68 = vmatpush1.bf16.msra.mxu0 0
  %69 = vmatprep.subr.bf16.mxu0 0
  %70 = vmatpush1.bf16.msra.mxu0 0
  %71 = vmatprep.subr.bf16.mxu0 0
  %72 = vmatpush1.bf16.msra.mxu0 0
  %73 = vmatprep.subr.bf16.mxu0 0
  %74 = vmatpush1.bf16.msra.mxu0 0
  %75 = vmatprep.subr.bf16.mxu0 0
  %76 = vmatpush1.bf16.msra.mxu0 0
  %77 = vmatprep.mubr.bf16.mxu0 0
  %78 = vmatmul.mubr.bf16.gmra.mrb[0].mxu0 %v34
  %v79 = vpop.f32.mrb[0].mxu0
  %v80 = vadd.f32 %v31, %v79
  %v81 = vpop.f32.mrb[0].mxu0
  %v82 = vpop.f32.mrb[0].mxu0
  %v83 = vadd.f32 %v31, %v82
  %v84 = vpop.f32.mrb[0].mxu0
  %85 = vmatprep.mubr.bf16.mxu0 0
  %86 = vmatmul.mubr.bf16.gmra.mrb[0].mxu0 %v37
  %v87 = vpop.f32.mrb[0].mxu0
  %v88 = vadd.f32 %v31, %v87
  %v89 = vpop.f32.mrb[0].mxu0
  %v90 = vpop.f32.mrb[0].mxu0
  %v91 = vadd.f32 %v31, %v90
  %v92 = vpop.f32.mrb[0].mxu0
  %93 = vmatprep.mubr.bf16.mxu0 0
  %94 = vmatmul.mubr.bf16.gmra.mrb[0].mxu0 %v40
  %v95 = vpop.f32.mrb[0].mxu0
  %v96 = vadd.f32 %v31, %v95
  %v97 = vpop.f32.mrb[0].mxu0
  %v98 = vpop.f32.mrb[0].mxu0
  %v99 = vadd.f32 %v31, %v98
  %v100 = vpop.f32.mrb[0].mxu0
  %101 = vmatprep.mubr.bf16.mxu0 0
  %102 = vmatmul.mubr.bf16.gmra.mrb[0].mxu0 %v43
  %v103 = vpop.f32.mrb[0].mxu0
  %v104 = vadd.f32 %v31, %v103
  %v105 = vpop.f32.mrb[0].mxu0
  %v106 = vpop.f32.mrb[0].mxu0
  %v107 = vadd.f32 %v31, %v106
  %v108 = vpop.f32.mrb[0].mxu0
  %109 = vdwg.mxu0
  %v110 = vld [vmem:[%s1 + $0x10] sm:$0xff]
  %v111 = vld [vmem:[%s1 + $0x18] sm:$0xff]
  %v112 = vld [vmem:[%s1 + $0x20] sm:$0xff]
  %v113 = vld [vmem:[%s1 + $0x28] sm:$0xff]
  %v114 = vpack.c.bf16 %v111, %v110
  %v115 = vpack.c.bf16 %v113, %v112
  %v116 = vld [vmem:[%s1 + $0x38] sm:$0xff]
  %v117 = vld [vmem:[%s1 + $0x40] sm:$0xff]
  %v118 = vld [vmem:[%s1 + $0x48] sm:$0xff]
  %v119 = vld [vmem:[%s1 + $0x50] sm:$0xff]
  %v120 = vpack.c.bf16 %v117, %v116
  %v121 = vpack.c.bf16 %v119, %v118
  %v122 = vld [vmem:[%s1 + $0x78] sm:$0x1]
  %vm123 = vcmask 261120
  %v125 = vsel %vm123, 0, 0
  %127 = vmatprep.subr.bf16.mxu0 0
  %128 = vmatpush1.bf16.msra.mxu0 %v114
  %129 = vmatprep.subr.bf16.mxu0 0
  %130 = vmatpush1.bf16.msra.mxu0 %v115
  %131 = vmatprep.subr.bf16.mxu0 0
  %132 = vmatpush1.bf16.msra.mxu0 0
  %133 = vmatprep.subr.bf16.mxu0 0
  %134 = vmatpush1.bf16.msra.mxu0 0
  %135 = vmatprep.subr.bf16.mxu0 0
  %136 = vmatpush1.bf16.msra.mxu0 0
  %137 = vmatprep.subr.bf16.mxu0 0
  %138 = vmatpush1.bf16.msra.mxu0 0
  %139 = vmatprep.subr.bf16.mxu0 0
  %140 = vmatpush1.bf16.msra.mxu0 0
  %141 = vmatprep.subr.bf16.mxu0 0
  %142 = vmatpush1.bf16.msra.mxu0 0
  %143 = vmatprep.subr.bf16.mxu0 0
  %144 = vmatpush1.bf16.msra.mxu0 0
  %145 = vmatprep.subr.bf16.mxu0 0
  %146 = vmatpush1.bf16.msra.mxu0 0
  %147 = vmatprep.subr.bf16.mxu0 0
  %148 = vmatpush1.bf16.msra.mxu0 0
  %149 = vmatprep.subr.bf16.mxu0 0
  %150 = vmatpush1.bf16.msra.mxu0 0
  %151 = vmatprep.subr.bf16.mxu0 0
  %152 = vmatpush1.bf16.msra.mxu0 0
  %153 = vmatprep.subr.bf16.mxu0 0
  %154 = vmatpush1.bf16.msra.mxu0 0
  %155 = vmatprep.subr.bf16.mxu0 0
  %156 = vmatpush1.bf16.msra.mxu0 0
  %157 = vmatprep.subr.bf16.mxu0 0
  %158 = vmatpush1.bf16.msra.mxu0 0
  %159 = vmatprep.mubr.bf16.mxu0 0
  %160 = vmatmul.mubr.bf16.gmra.mrb[0].mxu0 %v125
  %v161 = vpop.f32.mrb[0].mxu0
  %v162 = vadd.f32 0.0, %v161
  %v163 = vpop.f32.mrb[0].mxu0
  %v164 = vpop.f32.mrb[0].mxu0
  %v165 = vpop.f32.mrb[0].mxu0
  %166 = vdwg.mxu0
  %v167 = vadd.f32 %v80, %v162
  %v168 = vtanh.pop %v167
  %v169 = vmul.f32 %v168, 0.5
  %v170 = vadd.f32 %v169, 0.5
  %v171 = vmul.f32 %v170, 0.0
  %173 = vrot.lane.b32.xlu0 %v168, 64
  %v174 = vpop.permute.xlu0 %173
  %v176 = vmul.f32 %v170, %v174
  %178 = vrot.lane.b32.xlu0 %v176, 32
  %v179 = vpop.permute.xlu0 %178
  %v181 = vadd.f32 %v171, %v179
  %v182 = vtanh.pop %v181
  %184 = vrot.lane.b32.xlu0 %v182, 64
  %v185 = vpop.permute.xlu0 %184
  %v187 = vmul.f32 %v170, %v185
  %v188 = vpack.c.bf16 %v187, %v187
  %v189 = vlaneseq
  %v190 = vshrl.u32 %v189, 7
  %v191 = vsub.s32 0, %v190
  %v192 = vrot.slane %v122, %v191
  %194 = vrot.lane.b32.xlu0 %v188, 32
  %v195 = vpop.permute.xlu0 %194
  %v197 = vsel %vm123, %v195, 0
  %199 = vmatprep.subr.bf16.mxu0 0
  %200 = vmatpush1.bf16.msra.mxu0 %v120
  %201 = vmatprep.subr.bf16.mxu0 0
  %202 = vmatpush1.bf16.msra.mxu0 %v121
  %203 = vmatprep.subr.bf16.mxu0 0
  %204 = vmatpush1.bf16.msra.mxu0 0
  %205 = vmatprep.subr.bf16.mxu0 0
  %206 = vmatpush1.bf16.msra.mxu0 0
  %207 = vmatprep.subr.bf16.mxu0 0
  %208 = vmatpush1.bf16.msra.mxu0 0
  %209 = vmatprep.subr.bf16.mxu0 0
  %210 = vmatpush1.bf16.msra.mxu0 0
  %211 = vmatprep.subr.bf16.mxu0 0
  %212 = vmatpush1.bf16.msra.mxu0 0
  %213 = vmatprep.subr.bf16.mxu0 0
  %214 = vmatpush1.bf16.msra.mxu0 0
  %215 = vmatprep.subr.bf16.mxu0 0
  %216 = vmatpush1.bf16.msra.mxu0 0
  %217 = vmatprep.subr.bf16.mxu0 0
  %218 = vmatpush1.bf16.msra.mxu0 0
  %219 = vmatprep.subr.bf16.mxu0 0
  %220 = vmatpush1.bf16.msra.mxu0 0
  %221 = vmatprep.subr.bf16.mxu0 0
  %222 = vmatpush1.bf16.msra.mxu0 0
  %223 = vmatprep.subr.bf16.mxu0 0
  %224 = vmatpush1.bf16.msra.mxu0 0
  %225 = vmatprep.subr.bf16.mxu0 0
  %226 = vmatpush1.bf16.msra.mxu0 0
  %227 = vmatprep.subr.bf16.mxu0 0
  %228 = vmatpush1.bf16.msra.mxu0 0
  %229 = vmatprep.subr.bf16.mxu0 0
  %230 = vmatpush1.bf16.msra.mxu0 0
  %231 = vmatprep.mubr.bf16.mxu0 0
  %232 = vmatmul.mubr.bf16.gmra.mrb[0].mxu0 %v197
  %v233 = vpop.f32.mrb[0].mxu0
  %v234 = vadd.f32 %v192, %v233
  %v235 = vpop.f32.mrb[0].mxu0
  %v236 = vpop.f32.mrb[0].mxu0
  %v237 = vpop.f32.mrb[0].mxu0
  %238 = vdwg.mxu0
  %239 = vmatprep.subr.bf16.mxu0 0
  %240 = vmatpush1.bf16.msra.mxu0 %v114
  %241 = vmatprep.subr.bf16.mxu0 0
  %242 = vmatpush1.bf16.msra.mxu0 %v115
  %243 = vmatprep.subr.bf16.mxu0 0
  %244 = vmatpush1.bf16.msra.mxu0 0
  %245 = vmatprep.subr.bf16.mxu0 0
  %246 = vmatpush1.bf16.msra.mxu0 0
  %247 = vmatprep.subr.bf16.mxu0 0
  %248 = vmatpush1.bf16.msra.mxu0 0
  %249 = vmatprep.subr.bf16.mxu0 0
  %250 = vmatpush1.bf16.msra.mxu0 0
  %251 = vmatprep.subr.bf16.mxu0 0
  %252 = vmatpush1.bf16.msra.mxu0 0
  %253 = vmatprep.subr.bf16.mxu0 0
  %254 = vmatpush1.bf16.msra.mxu0 0
  %255 = vmatprep.subr.bf16.mxu0 0
  %256 = vmatpush1.bf16.msra.mxu0 0
  %257 = vmatprep.subr.bf16.mxu0 0
  %258 = vmatpush1.bf16.msra.mxu0 0
  %259 = vmatprep.subr.bf16.mxu0 0
  %260 = vmatpush1.bf16.msra.mxu0 0
  %261 = vmatprep.subr.bf16.mxu0 0
  %262 = vmatpush1.bf16.msra.mxu0 0
  %263 = vmatprep.subr.bf16.mxu0 0
  %264 = vmatpush1.bf16.msra.mxu0 0
  %265 = vmatprep.subr.bf16.mxu0 0
  %266 = vmatpush1.bf16.msra.mxu0 0
  %267 = vmatprep.subr.bf16.mxu0 0
  %268 = vmatpush1.bf16.msra.mxu0 0
  %269 = vmatprep.subr.bf16.mxu0 0
  %270 = vmatpush1.bf16.msra.mxu0 0
  %271 = vmatprep.mubr.bf16.mxu0 0
  %272 = vmatmul.mubr.bf16.gmra.mrb[0].mxu0 %v197
  %v273 = vpop.f32.mrb[0].mxu0
  %v274 = vadd.f32 0.0, %v273
  %v275 = vpop.f32.mrb[0].mxu0
  %v276 = vpop.f32.mrb[0].mxu0
  %v277 = vpop.f32.mrb[0].mxu0
  %278 = vdwg.mxu0
  %v279 = vadd.f32 %v83, %v274
  %v280 = vtanh.pop %v279
  %v281 = vmul.f32 %v280, 0.5
  %v282 = vadd.f32 %v281, 0.5
  %v283 = vmul.f32 %v282, %v181
  %285 = vrot.lane.b32.xlu0 %v280, 64
  %v286 = vpop.permute.xlu0 %285
  %v288 = vmul.f32 %v282, %v286
  %290 = vrot.lane.b32.xlu0 %v288, 32
  %v291 = vpop.permute.xlu0 %290
  %v293 = vadd.f32 %v283, %v291
  %v294 = vtanh.pop %v293
  %296 = vrot.lane.b32.xlu0 %v294, 64
  %v297 = vpop.permute.xlu0 %296
  %v299 = vmul.f32 %v282, %v297
  %v300 = vpack.c.bf16 %v299, %v299
  %302 = vrot.lane.b32.xlu0 %v300, 32
  %v303 = vpop.permute.xlu0 %302
  %v305 = vsel %vm123, %v303, 0
  %307 = vmatprep.subr.bf16.mxu0 0
  %308 = vmatpush1.bf16.msra.mxu0 %v120
  %309 = vmatprep.subr.bf16.mxu0 0
  %310 = vmatpush1.bf16.msra.mxu0 %v121
  %311 = vmatprep.subr.bf16.mxu0 0
  %312 = vmatpush1.bf16.msra.mxu0 0
  %313 = vmatprep.subr.bf16.mxu0 0
  %314 = vmatpush1.bf16.msra.mxu0 0
  %315 = vmatprep.subr.bf16.mxu0 0
  %316 = vmatpush1.bf16.msra.mxu0 0
  %317 = vmatprep.subr.bf16.mxu0 0
  %318 = vmatpush1.bf16.msra.mxu0 0
  %319 = vmatprep.subr.bf16.mxu0 0
  %320 = vmatpush1.bf16.msra.mxu0 0
  %321 = vmatprep.subr.bf16.mxu0 0
  %322 = vmatpush1.bf16.msra.mxu0 0
  %323 = vmatprep.subr.bf16.mxu0 0
  %324 = vmatpush1.bf16.msra.mxu0 0
  %325 = vmatprep.subr.bf16.mxu0 0
  %326 = vmatpush1.bf16.msra.mxu0 0
  %327 = vmatprep.subr.bf16.mxu0 0
  %328 = vmatpush1.bf16.msra.mxu0 0
  %329 = vmatprep.subr.bf16.mxu0 0
  %330 = vmatpush1.bf16.msra.mxu0 0
  %331 = vmatprep.subr.bf16.mxu0 0
  %332 = vmatpush1.bf16.msra.mxu0 0
  %333 = vmatprep.subr.bf16.mxu0 0
  %334 = vmatpush1.bf16.msra.mxu0 0
  %335 = vmatprep.subr.bf16.mxu0 0
  %336 = vmatpush1.bf16.msra.mxu0 0
  %337 = vmatprep.subr.bf16.mxu0 0
  %338 = vmatpush1.bf16.msra.mxu0 0
  %339 = vmatprep.mubr.bf16.mxu0 0
  %340 = vmatmul.mubr.bf16.gmra.mrb[0].mxu0 %v305
  %v341 = vpop.f32.mrb[0].mxu0
  %v342 = vadd.f32 %v192, %v341
  %v343 = vpop.f32.mrb[0].mxu0
  %v344 = vpop.f32.mrb[0].mxu0
  %v345 = vpop.f32.mrb[0].mxu0
  %346 = vdwg.mxu0
  %347 = vmatprep.subr.bf16.mxu0 0
  %348 = vmatpush1.bf16.msra.mxu0 %v114
  %349 = vmatprep.subr.bf16.mxu0 0
  %350 = vmatpush1.bf16.msra.mxu0 %v115
  %351 = vmatprep.subr.bf16.mxu0 0
  %352 = vmatpush1.bf16.msra.mxu0 0
  %353 = vmatprep.subr.bf16.mxu0 0
  %354 = vmatpush1.bf16.msra.mxu0 0
  %355 = vmatprep.subr.bf16.mxu0 0
  %356 = vmatpush1.bf16.msra.mxu0 0
  %357 = vmatprep.subr.bf16.mxu0 0
  %358 = vmatpush1.bf16.msra.mxu0 0
  %359 = vmatprep.subr.bf16.mxu0 0
  %360 = vmatpush1.bf16.msra.mxu0 0
  %361 = vmatprep.subr.bf16.mxu0 0
  %362 = vmatpush1.bf16.msra.mxu0 0
  %363 = vmatprep.subr.bf16.mxu0 0
  %364 = vmatpush1.bf16.msra.mxu0 0
  %365 = vmatprep.subr.bf16.mxu0 0
  %366 = vmatpush1.bf16.msra.mxu0 0
  %367 = vmatprep.subr.bf16.mxu0 0
  %368 = vmatpush1.bf16.msra.mxu0 0
  %369 = vmatprep.subr.bf16.mxu0 0
  %370 = vmatpush1.bf16.msra.mxu0 0
  %371 = vmatprep.subr.bf16.mxu0 0
  %372 = vmatpush1.bf16.msra.mxu0 0
  %373 = vmatprep.subr.bf16.mxu0 0
  %374 = vmatpush1.bf16.msra.mxu0 0
  %375 = vmatprep.subr.bf16.mxu0 0
  %376 = vmatpush1.bf16.msra.mxu0 0
  %377 = vmatprep.subr.bf16.mxu0 0
  %378 = vmatpush1.bf16.msra.mxu0 0
  %379 = vmatprep.mubr.bf16.mxu0 0
  %380 = vmatmul.mubr.bf16.gmra.mrb[0].mxu0 %v305
  %v381 = vpop.f32.mrb[0].mxu0
  %v382 = vadd.f32 0.0, %v381
  %v383 = vpop.f32.mrb[0].mxu0
  %v384 = vpop.f32.mrb[0].mxu0
  %v385 = vpop.f32.mrb[0].mxu0
  %386 = vdwg.mxu0
  %v387 = vadd.f32 %v88, %v382
  %v388 = vtanh.pop %v387
  %v389 = vmul.f32 %v388, 0.5
  %v390 = vadd.f32 %v389, 0.5
  %v391 = vmul.f32 %v390, %v293
  %393 = vrot.lane.b32.xlu0 %v388, 64
  %v394 = vpop.permute.xlu0 %393
  %v396 = vmul.f32 %v390, %v394
  %398 = vrot.lane.b32.xlu0 %v396, 32
  %v399 = vpop.permute.xlu0 %398
  %v401 = vadd.f32 %v391, %v399
  %v402 = vtanh.pop %v401
  %404 = vrot.lane.b32.xlu0 %v402, 64
  %v405 = vpop.permute.xlu0 %404
  %v407 = vmul.f32 %v390, %v405
  %v408 = vpack.c.bf16 %v407, %v407
  %410 = vrot.lane.b32.xlu0 %v408, 32
  %v411 = vpop.permute.xlu0 %410
  %v413 = vsel %vm123, %v411, 0
  %415 = vmatprep.subr.bf16.mxu0 0
  %416 = vmatpush1.bf16.msra.mxu0 %v120
  %417 = vmatprep.subr.bf16.mxu0 0
  %418 = vmatpush1.bf16.msra.mxu0 %v121
  %419 = vmatprep.subr.bf16.mxu0 0
  %420 = vmatpush1.bf16.msra.mxu0 0
  %421 = vmatprep.subr.bf16.mxu0 0
  %422 = vmatpush1.bf16.msra.mxu0 0
  %423 = vmatprep.subr.bf16.mxu0 0
  %424 = vmatpush1.bf16.msra.mxu0 0
  %425 = vmatprep.subr.bf16.mxu0 0
  %426 = vmatpush1.bf16.msra.mxu0 0
  %427 = vmatprep.subr.bf16.mxu0 0
  %428 = vmatpush1.bf16.msra.mxu0 0
  %429 = vmatprep.subr.bf16.mxu0 0
  %430 = vmatpush1.bf16.msra.mxu0 0
  %431 = vmatprep.subr.bf16.mxu0 0
  %432 = vmatpush1.bf16.msra.mxu0 0
  %433 = vmatprep.subr.bf16.mxu0 0
  %434 = vmatpush1.bf16.msra.mxu0 0
  %435 = vmatprep.subr.bf16.mxu0 0
  %436 = vmatpush1.bf16.msra.mxu0 0
  %437 = vmatprep.subr.bf16.mxu0 0
  %438 = vmatpush1.bf16.msra.mxu0 0
  %439 = vmatprep.subr.bf16.mxu0 0
  %440 = vmatpush1.bf16.msra.mxu0 0
  %441 = vmatprep.subr.bf16.mxu0 0
  %442 = vmatpush1.bf16.msra.mxu0 0
  %443 = vmatprep.subr.bf16.mxu0 0
  %444 = vmatpush1.bf16.msra.mxu0 0
  %445 = vmatprep.subr.bf16.mxu0 0
  %446 = vmatpush1.bf16.msra.mxu0 0
  %447 = vmatprep.mubr.bf16.mxu0 0
  %448 = vmatmul.mubr.bf16.gmra.mrb[0].mxu0 %v413
  %v449 = vpop.f32.mrb[0].mxu0
  %v450 = vadd.f32 %v192, %v449
  %v451 = vpop.f32.mrb[0].mxu0
  %v452 = vpop.f32.mrb[0].mxu0
  %v453 = vpop.f32.mrb[0].mxu0
  %454 = vdwg.mxu0
  %455 = vmatprep.subr.bf16.mxu0 0
  %456 = vmatpush1.bf16.msra.mxu0 %v114
  %457 = vmatprep.subr.bf16.mxu0 0
  %458 = vmatpush1.bf16.msra.mxu0 %v115
  %459 = vmatprep.subr.bf16.mxu0 0
  %460 = vmatpush1.bf16.msra.mxu0 0
  %461 = vmatprep.subr.bf16.mxu0 0
  %462 = vmatpush1.bf16.msra.mxu0 0
  %463 = vmatprep.subr.bf16.mxu0 0
  %464 = vmatpush1.bf16.msra.mxu0 0
  %465 = vmatprep.subr.bf16.mxu0 0
  %466 = vmatpush1.bf16.msra.mxu0 0
  %467 = vmatprep.subr.bf16.mxu0 0
  %468 = vmatpush1.bf16.msra.mxu0 0
  %469 = vmatprep.subr.bf16.mxu0 0
  %470 = vmatpush1.bf16.msra.mxu0 0
  %471 = vmatprep.subr.bf16.mxu0 0
  %472 = vmatpush1.bf16.msra.mxu0 0
  %473 = vmatprep.subr.bf16.mxu0 0
  %474 = vmatpush1.bf16.msra.mxu0 0
  %475 = vmatprep.subr.bf16.mxu0 0
  %476 = vmatpush1.bf16.msra.mxu0 0
  %477 = vmatprep.subr.bf16.mxu0 0
  %478 = vmatpush1.bf16.msra.mxu0 0
  %479 = vmatprep.subr.bf16.mxu0 0
  %480 = vmatpush1.bf16.msra.mxu0 0
  %481 = vmatprep.subr.bf16.mxu0 0
  %482 = vmatpush1.bf16.msra.mxu0 0
  %483 = vmatprep.subr.bf16.mxu0 0
  %484 = vmatpush1.bf16.msra.mxu0 0
  %485 = vmatprep.subr.bf16.mxu0 0
  %486 = vmatpush1.bf16.msra.mxu0 0
  %487 = vmatprep.mubr.bf16.mxu0 0
  %488 = vmatmul.mubr.bf16.gmra.mrb[0].mxu0 %v413
  %v489 = vpop.f32.mrb[0].mxu0
  %v490 = vadd.f32 0.0, %v489
  %v491 = vpop.f32.mrb[0].mxu0
  %v492 = vpop.f32.mrb[0].mxu0
  %v493 = vpop.f32.mrb[0].mxu0
  %494 = vdwg.mxu0
  %v495 = vadd.f32 %v91, %v490
  %v496 = vtanh.pop %v495
  %v497 = vmul.f32 %v496, 0.5
  %v498 = vadd.f32 %v497, 0.5
  %v499 = vmul.f32 %v498, %v401
  %501 = vrot.lane.b32.xlu0 %v496, 64
  %v502 = vpop.permute.xlu0 %501
  %v504 = vmul.f32 %v498, %v502
  %506 = vrot.lane.b32.xlu0 %v504, 32
  %v507 = vpop.permute.xlu0 %506
  %v509 = vadd.f32 %v499, %v507
  %v510 = vtanh.pop %v509
  %512 = vrot.lane.b32.xlu0 %v510, 64
  %v513 = vpop.permute.xlu0 %512
  %v515 = vmul.f32 %v498, %v513
  %v516 = vpack.c.bf16 %v515, %v515
  %518 = vrot.lane.b32.xlu0 %v516, 32
  %v519 = vpop.permute.xlu0 %518
  %v521 = vsel %vm123, %v519, 0
  %523 = vmatprep.subr.bf16.mxu0 0
  %524 = vmatpush1.bf16.msra.mxu0 %v120
  %525 = vmatprep.subr.bf16.mxu0 0
  %526 = vmatpush1.bf16.msra.mxu0 %v121
  %527 = vmatprep.subr.bf16.mxu0 0
  %528 = vmatpush1.bf16.msra.mxu0 0
  %529 = vmatprep.subr.bf16.mxu0 0
  %530 = vmatpush1.bf16.msra.mxu0 0
  %531 = vmatprep.subr.bf16.mxu0 0
  %532 = vmatpush1.bf16.msra.mxu0 0
  %533 = vmatprep.subr.bf16.mxu0 0
  %534 = vmatpush1.bf16.msra.mxu0 0
  %535 = vmatprep.subr.bf16.mxu0 0
  %536 = vmatpush1.bf16.msra.mxu0 0
  %537 = vmatprep.subr.bf16.mxu0 0
  %538 = vmatpush1.bf16.msra.mxu0 0
  %539 = vmatprep.subr.bf16.mxu0 0
  %540 = vmatpush1.bf16.msra.mxu0 0
  %541 = vmatprep.subr.bf16.mxu0 0
  %542 = vmatpush1.bf16.msra.mxu0 0
  %543 = vmatprep.subr.bf16.mxu0 0
  %544 = vmatpush1.bf16.msra.mxu0 0
  %545 = vmatprep.subr.bf16.mxu0 0
  %546 = vmatpush1.bf16.msra.mxu0 0
  %547 = vmatprep.subr.bf16.mxu0 0
  %548 = vmatpush1.bf16.msra.mxu0 0
  %549 = vmatprep.subr.bf16.mxu0 0
  %550 = vmatpush1.bf16.msra.mxu0 0
  %551 = vmatprep.subr.bf16.mxu0 0
  %552 = vmatpush1.bf16.msra.mxu0 0
  %553 = vmatprep.subr.bf16.mxu0 0
  %554 = vmatpush1.bf16.msra.mxu0 0
  %555 = vmatprep.mubr.bf16.mxu0 0
  %556 = vmatmul.mubr.bf16.gmra.mrb[0].mxu0 %v521
  %v557 = vpop.f32.mrb[0].mxu0
  %v558 = vadd.f32 %v192, %v557
  %v559 = vpop.f32.mrb[0].mxu0
  %v560 = vpop.f32.mrb[0].mxu0
  %v561 = vpop.f32.mrb[0].mxu0
  %562 = vdwg.mxu0
  %563 = vmatprep.subr.bf16.mxu0 0
  %564 = vmatpush1.bf16.msra.mxu0 %v114
  %565 = vmatprep.subr.bf16.mxu0 0
  %566 = vmatpush1.bf16.msra.mxu0 %v115
  %567 = vmatprep.subr.bf16.mxu0 0
  %568 = vmatpush1.bf16.msra.mxu0 0
  %569 = vmatprep.subr.bf16.mxu0 0
  %570 = vmatpush1.bf16.msra.mxu0 0
  %571 = vmatprep.subr.bf16.mxu0 0
  %572 = vmatpush1.bf16.msra.mxu0 0
  %573 = vmatprep.subr.bf16.mxu0 0
  %574 = vmatpush1.bf16.msra.mxu0 0
  %575 = vmatprep.subr.bf16.mxu0 0
  %576 = vmatpush1.bf16.msra.mxu0 0
  %577 = vmatprep.subr.bf16.mxu0 0
  %578 = vmatpush1.bf16.msra.mxu0 0
  %579 = vmatprep.subr.bf16.mxu0 0
  %580 = vmatpush1.bf16.msra.mxu0 0
  %581 = vmatprep.subr.bf16.mxu0 0
  %582 = vmatpush1.bf16.msra.mxu0 0
  %583 = vmatprep.subr.bf16.mxu0 0
  %584 = vmatpush1.bf16.msra.mxu0 0
  %585 = vmatprep.subr.bf16.mxu0 0
  %586 = vmatpush1.bf16.msra.mxu0 0
  %587 = vmatprep.subr.bf16.mxu0 0
  %588 = vmatpush1.bf16.msra.mxu0 0
  %589 = vmatprep.subr.bf16.mxu0 0
  %590 = vmatpush1.bf16.msra.mxu0 0
  %591 = vmatprep.subr.bf16.mxu0 0
  %592 = vmatpush1.bf16.msra.mxu0 0
  %593 = vmatprep.subr.bf16.mxu0 0
  %594 = vmatpush1.bf16.msra.mxu0 0
  %595 = vmatprep.mubr.bf16.mxu0 0
  %596 = vmatmul.mubr.bf16.gmra.mrb[0].mxu0 %v521
  %v597 = vpop.f32.mrb[0].mxu0
  %v598 = vadd.f32 0.0, %v597
  %v599 = vpop.f32.mrb[0].mxu0
  %v600 = vpop.f32.mrb[0].mxu0
  %v601 = vpop.f32.mrb[0].mxu0
  %602 = vdwg.mxu0
  %v603 = vadd.f32 %v96, %v598
  %v604 = vtanh.pop %v603
  %v605 = vmul.f32 %v604, 0.5
  %v606 = vadd.f32 %v605, 0.5
  %v607 = vmul.f32 %v606, %v509
  %609 = vrot.lane.b32.xlu0 %v604, 64
  %v610 = vpop.permute.xlu0 %609
  %v612 = vmul.f32 %v606, %v610
  %614 = vrot.lane.b32.xlu0 %v612, 32
  %v615 = vpop.permute.xlu0 %614
  %v617 = vadd.f32 %v607, %v615
  %v618 = vtanh.pop %v617
  %620 = vrot.lane.b32.xlu0 %v618, 64
  %v621 = vpop.permute.xlu0 %620
  %v623 = vmul.f32 %v606, %v621
  %v624 = vpack.c.bf16 %v623, %v623
  %626 = vrot.lane.b32.xlu0 %v624, 32
  %v627 = vpop.permute.xlu0 %626
  %v629 = vsel %vm123, %v627, 0
  %631 = vmatprep.subr.bf16.mxu0 0
  %632 = vmatpush1.bf16.msra.mxu0 %v120
  %633 = vmatprep.subr.bf16.mxu0 0
  %634 = vmatpush1.bf16.msra.mxu0 %v121
  %635 = vmatprep.subr.bf16.mxu0 0
  %636 = vmatpush1.bf16.msra.mxu0 0
  %637 = vmatprep.subr.bf16.mxu0 0
  %638 = vmatpush1.bf16.msra.mxu0 0
  %639 = vmatprep.subr.bf16.mxu0 0
  %640 = vmatpush1.bf16.msra.mxu0 0
  %641 = vmatprep.subr.bf16.mxu0 0
  %642 = vmatpush1.bf16.msra.mxu0 0
  %643 = vmatprep.subr.bf16.mxu0 0
  %644 = vmatpush1.bf16.msra.mxu0 0
  %645 = vmatprep.subr.bf16.mxu0 0
  %646 = vmatpush1.bf16.msra.mxu0 0
  %647 = vmatprep.subr.bf16.mxu0 0
  %648 = vmatpush1.bf16.msra.mxu0 0
  %649 = vmatprep.subr.bf16.mxu0 0
  %650 = vmatpush1.bf16.msra.mxu0 0
  %651 = vmatprep.subr.bf16.mxu0 0
  %652 = vmatpush1.bf16.msra.mxu0 0
  %653 = vmatprep.subr.bf16.mxu0 0
  %654 = vmatpush1.bf16.msra.mxu0 0
  %655 = vmatprep.subr.bf16.mxu0 0
  %656 = vmatpush1.bf16.msra.mxu0 0
  %657 = vmatprep.subr.bf16.mxu0 0
  %658 = vmatpush1.bf16.msra.mxu0 0
  %659 = vmatprep.subr.bf16.mxu0 0
  %660 = vmatpush1.bf16.msra.mxu0 0
  %661 = vmatprep.subr.bf16.mxu0 0
  %662 = vmatpush1.bf16.msra.mxu0 0
  %663 = vmatprep.mubr.bf16.mxu0 0
  %664 = vmatmul.mubr.bf16.gmra.mrb[0].mxu0 %v629
  %v665 = vpop.f32.mrb[0].mxu0
  %v666 = vadd.f32 %v192, %v665
  %v667 = vpop.f32.mrb[0].mxu0
  %v668 = vpop.f32.mrb[0].mxu0
  %v669 = vpop.f32.mrb[0].mxu0
  %670 = vdwg.mxu0
  %671 = vmatprep.subr.bf16.mxu0 0
  %672 = vmatpush1.bf16.msra.mxu0 %v114
  %673 = vmatprep.subr.bf16.mxu0 0
  %674 = vmatpush1.bf16.msra.mxu0 %v115
  %675 = vmatprep.subr.bf16.mxu0 0
  %676 = vmatpush1.bf16.msra.mxu0 0
  %677 = vmatprep.subr.bf16.mxu0 0
  %678 = vmatpush1.bf16.msra.mxu0 0
  %679 = vmatprep.subr.bf16.mxu0 0
  %680 = vmatpush1.bf16.msra.mxu0 0
  %681 = vmatprep.subr.bf16.mxu0 0
  %682 = vmatpush1.bf16.msra.mxu0 0
  %683 = vmatprep.subr.bf16.mxu0 0
  %684 = vmatpush1.bf16.msra.mxu0 0
  %685 = vmatprep.subr.bf16.mxu0 0
  %686 = vmatpush1.bf16.msra.mxu0 0
  %687 = vmatprep.subr.bf16.mxu0 0
  %688 = vmatpush1.bf16.msra.mxu0 0
  %689 = vmatprep.subr.bf16.mxu0 0
  %690 = vmatpush1.bf16.msra.mxu0 0
  %691 = vmatprep.subr.bf16.mxu0 0
  %692 = vmatpush1.bf16.msra.mxu0 0
  %693 = vmatprep.subr.bf16.mxu0 0
  %694 = vmatpush1.bf16.msra.mxu0 0
  %695 = vmatprep.subr.bf16.mxu0 0
  %696 = vmatpush1.bf16.msra.mxu0 0
  %697 = vmatprep.subr.bf16.mxu0 0
  %698 = vmatpush1.bf16.msra.mxu0 0
  %699 = vmatprep.subr.bf16.mxu0 0
  %700 = vmatpush1.bf16.msra.mxu0 0
  %701 = vmatprep.subr.bf16.mxu0 0
  %702 = vmatpush1.bf16.msra.mxu0 0
  %703 = vmatprep.mubr.bf16.mxu0 0
  %704 = vmatmul.mubr.bf16.gmra.mrb[0].mxu0 %v629
  %v705 = vpop.f32.mrb[0].mxu0
  %v706 = vadd.f32 0.0, %v705
  %v707 = vpop.f32.mrb[0].mxu0
  %v708 = vpop.f32.mrb[0].mxu0
  %v709 = vpop.f32.mrb[0].mxu0
  %710 = vdwg.mxu0
  %v711 = vadd.f32 %v99, %v706
  %v712 = vtanh.pop %v711
  %v713 = vmul.f32 %v712, 0.5
  %v714 = vadd.f32 %v713, 0.5
  %v715 = vmul.f32 %v714, %v617
  %717 = vrot.lane.b32.xlu0 %v712, 64
  %v718 = vpop.permute.xlu0 %717
  %v720 = vmul.f32 %v714, %v718
  %722 = vrot.lane.b32.xlu0 %v720, 32
  %v723 = vpop.permute.xlu0 %722
  %v725 = vadd.f32 %v715, %v723
  %v726 = vtanh.pop %v725
  %728 = vrot.lane.b32.xlu0 %v726, 64
  %v729 = vpop.permute.xlu0 %728
  %v731 = vmul.f32 %v714, %v729
  %v732 = vpack.c.bf16 %v731, %v731
  %734 = vrot.lane.b32.xlu0 %v732, 32
  %v735 = vpop.permute.xlu0 %734
  %v737 = vsel %vm123, %v735, 0
  %739 = vmatprep.subr.bf16.mxu0 0
  %740 = vmatpush1.bf16.msra.mxu0 %v120
  %741 = vmatprep.subr.bf16.mxu0 0
  %742 = vmatpush1.bf16.msra.mxu0 %v121
  %743 = vmatprep.subr.bf16.mxu0 0
  %744 = vmatpush1.bf16.msra.mxu0 0
  %745 = vmatprep.subr.bf16.mxu0 0
  %746 = vmatpush1.bf16.msra.mxu0 0
  %747 = vmatprep.subr.bf16.mxu0 0
  %748 = vmatpush1.bf16.msra.mxu0 0
  %749 = vmatprep.subr.bf16.mxu0 0
  %750 = vmatpush1.bf16.msra.mxu0 0
  %751 = vmatprep.subr.bf16.mxu0 0
  %752 = vmatpush1.bf16.msra.mxu0 0
  %753 = vmatprep.subr.bf16.mxu0 0
  %754 = vmatpush1.bf16.msra.mxu0 0
  %755 = vmatprep.subr.bf16.mxu0 0
  %756 = vmatpush1.bf16.msra.mxu0 0
  %757 = vmatprep.subr.bf16.mxu0 0
  %758 = vmatpush1.bf16.msra.mxu0 0
  %759 = vmatprep.subr.bf16.mxu0 0
  %760 = vmatpush1.bf16.msra.mxu0 0
  %761 = vmatprep.subr.bf16.mxu0 0
  %762 = vmatpush1.bf16.msra.mxu0 0
  %763 = vmatprep.subr.bf16.mxu0 0
  %764 = vmatpush1.bf16.msra.mxu0 0
  %765 = vmatprep.subr.bf16.mxu0 0
  %766 = vmatpush1.bf16.msra.mxu0 0
  %767 = vmatprep.subr.bf16.mxu0 0
  %768 = vmatpush1.bf16.msra.mxu0 0
  %769 = vmatprep.subr.bf16.mxu0 0
  %770 = vmatpush1.bf16.msra.mxu0 0
  %771 = vmatprep.mubr.bf16.mxu0 0
  %772 = vmatmul.mubr.bf16.gmra.mrb[0].mxu0 %v737
  %v773 = vpop.f32.mrb[0].mxu0
  %v774 = vadd.f32 %v192, %v773
  %v775 = vpop.f32.mrb[0].mxu0
  %v776 = vpop.f32.mrb[0].mxu0
  %v777 = vpop.f32.mrb[0].mxu0
  %778 = vdwg.mxu0
  %779 = vmatprep.subr.bf16.mxu0 0
  %780 = vmatpush1.bf16.msra.mxu0 %v114
  %781 = vmatprep.subr.bf16.mxu0 0
  %782 = vmatpush1.bf16.msra.mxu0 %v115
  %783 = vmatprep.subr.bf16.mxu0 0
  %784 = vmatpush1.bf16.msra.mxu0 0
  %785 = vmatprep.subr.bf16.mxu0 0
  %786 = vmatpush1.bf16.msra.mxu0 0
  %787 = vmatprep.subr.bf16.mxu0 0
  %788 = vmatpush1.bf16.msra.mxu0 0
  %789 = vmatprep.subr.bf16.mxu0 0
  %790 = vmatpush1.bf16.msra.mxu0 0
  %791 = vmatprep.subr.bf16.mxu0 0
  %792 = vmatpush1.bf16.msra.mxu0 0
  %793 = vmatprep.subr.bf16.mxu0 0
  %794 = vmatpush1.bf16.msra.mxu0 0
  %795 = vmatprep.subr.bf16.mxu0 0
  %796 = vmatpush1.bf16.msra.mxu0 0
  %797 = vmatprep.subr.bf16.mxu0 0
  %798 = vmatpush1.bf16.msra.mxu0 0
  %799 = vmatprep.subr.bf16.mxu0 0
  %800 = vmatpush1.bf16.msra.mxu0 0
  %801 = vmatprep.subr.bf16.mxu0 0
  %802 = vmatpush1.bf16.msra.mxu0 0
  %803 = vmatprep.subr.bf16.mxu0 0
  %804 = vmatpush1.bf16.msra.mxu0 0
  %805 = vmatprep.subr.bf16.mxu0 0
  %806 = vmatpush1.bf16.msra.mxu0 0
  %807 = vmatprep.subr.bf16.mxu0 0
  %808 = vmatpush1.bf16.msra.mxu0 0
  %809 = vmatprep.subr.bf16.mxu0 0
  %810 = vmatpush1.bf16.msra.mxu0 0
  %811 = vmatprep.mubr.bf16.mxu0 0
  %812 = vmatmul.mubr.bf16.gmra.mrb[0].mxu0 %v737
  %v813 = vpop.f32.mrb[0].mxu0
  %v814 = vadd.f32 0.0, %v813
  %v815 = vpop.f32.mrb[0].mxu0
  %v816 = vpop.f32.mrb[0].mxu0
  %v817 = vpop.f32.mrb[0].mxu0
  %818 = vdwg.mxu0
  %v819 = vadd.f32 %v104, %v814
  %v820 = vtanh.pop %v819
  %v821 = vmul.f32 %v820, 0.5
  %v822 = vadd.f32 %v821, 0.5
  %v823 = vmul.f32 %v822, %v725
  %825 = vrot.lane.b32.xlu0 %v820, 64
  %v826 = vpop.permute.xlu0 %825
  %v828 = vmul.f32 %v822, %v826
  %830 = vrot.lane.b32.xlu0 %v828, 32
  %v831 = vpop.permute.xlu0 %830
  %v833 = vadd.f32 %v823, %v831
  %v834 = vtanh.pop %v833
  %836 = vrot.lane.b32.xlu0 %v834, 64
  %v837 = vpop.permute.xlu0 %836
  %v839 = vmul.f32 %v822, %v837
  %v840 = vpack.c.bf16 %v839, %v839
  %842 = vrot.lane.b32.xlu0 %v840, 32
  %v843 = vpop.permute.xlu0 %842
  %v845 = vsel %vm123, %v843, 0
  %847 = vmatprep.subr.bf16.mxu0 0
  %848 = vmatpush1.bf16.msra.mxu0 %v120
  %849 = vmatprep.subr.bf16.mxu0 0
  %850 = vmatpush1.bf16.msra.mxu0 %v121
  %851 = vmatprep.subr.bf16.mxu0 0
  %852 = vmatpush1.bf16.msra.mxu0 0
  %853 = vmatprep.subr.bf16.mxu0 0
  %854 = vmatpush1.bf16.msra.mxu0 0
  %855 = vmatprep.subr.bf16.mxu0 0
  %856 = vmatpush1.bf16.msra.mxu0 0
  %857 = vmatprep.subr.bf16.mxu0 0
  %858 = vmatpush1.bf16.msra.mxu0 0
  %859 = vmatprep.subr.bf16.mxu0 0
  %860 = vmatpush1.bf16.msra.mxu0 0
  %861 = vmatprep.subr.bf16.mxu0 0
  %862 = vmatpush1.bf16.msra.mxu0 0
  %863 = vmatprep.subr.bf16.mxu0 0
  %864 = vmatpush1.bf16.msra.mxu0 0
  %865 = vmatprep.subr.bf16.mxu0 0
  %866 = vmatpush1.bf16.msra.mxu0 0
  %867 = vmatprep.subr.bf16.mxu0 0
  %868 = vmatpush1.bf16.msra.mxu0 0
  %869 = vmatprep.subr.bf16.mxu0 0
  %870 = vmatpush1.bf16.msra.mxu0 0
  %871 = vmatprep.subr.bf16.mxu0 0
  %872 = vmatpush1.bf16.msra.mxu0 0
  %873 = vmatprep.subr.bf16.mxu0 0
  %874 = vmatpush1.bf16.msra.mxu0 0
  %875 = vmatprep.subr.bf16.mxu0 0
  %876 = vmatpush1.bf16.msra.mxu0 0
  %877 = vmatprep.subr.bf16.mxu0 0
  %878 = vmatpush1.bf16.msra.mxu0 0
  %879 = vmatprep.mubr.bf16.mxu0 0
  %880 = vmatmul.mubr.bf16.gmra.mrb[0].mxu0 %v845
  %v881 = vpop.f32.mrb[0].mxu0
  %v882 = vadd.f32 %v192, %v881
  %v883 = vpop.f32.mrb[0].mxu0
  %v884 = vpop.f32.mrb[0].mxu0
  %v885 = vpop.f32.mrb[0].mxu0
  %886 = vdwg.mxu0
  %887 = vmatprep.subr.bf16.mxu0 0
  %888 = vmatpush1.bf16.msra.mxu0 %v114
  %889 = vmatprep.subr.bf16.mxu0 0
  %890 = vmatpush1.bf16.msra.mxu0 %v115
  %891 = vmatprep.subr.bf16.mxu0 0
  %892 = vmatpush1.bf16.msra.mxu0 0
  %893 = vmatprep.subr.bf16.mxu0 0
  %894 = vmatpush1.bf16.msra.mxu0 0
  %895 = vmatprep.subr.bf16.mxu0 0
  %896 = vmatpush1.bf16.msra.mxu0 0
  %897 = vmatprep.subr.bf16.mxu0 0
  %898 = vmatpush1.bf16.msra.mxu0 0
  %899 = vmatprep.subr.bf16.mxu0 0
  %900 = vmatpush1.bf16.msra.mxu0 0
  %901 = vmatprep.subr.bf16.mxu0 0
  %902 = vmatpush1.bf16.msra.mxu0 0
  %903 = vmatprep.subr.bf16.mxu0 0
  %904 = vmatpush1.bf16.msra.mxu0 0
  %905 = vmatprep.subr.bf16.mxu0 0
  %906 = vmatpush1.bf16.msra.mxu0 0
  %907 = vmatprep.subr.bf16.mxu0 0
  %908 = vmatpush1.bf16.msra.mxu0 0
  %909 = vmatprep.subr.bf16.mxu0 0
  %910 = vmatpush1.bf16.msra.mxu0 0
  %911 = vmatprep.subr.bf16.mxu0 0
  %912 = vmatpush1.bf16.msra.mxu0 0
  %913 = vmatprep.subr.bf16.mxu0 0
  %914 = vmatpush1.bf16.msra.mxu0 0
  %915 = vmatprep.subr.bf16.mxu0 0
  %916 = vmatpush1.bf16.msra.mxu0 0
  %917 = vmatprep.subr.bf16.mxu0 0
  %918 = vmatpush1.bf16.msra.mxu0 0
  %919 = vmatprep.mubr.bf16.mxu0 0
  %920 = vmatmul.mubr.bf16.gmra.mrb[0].mxu0 %v845
  %v921 = vpop.f32.mrb[0].mxu0
  %v922 = vadd.f32 0.0, %v921
  %v923 = vpop.f32.mrb[0].mxu0
  %v924 = vpop.f32.mrb[0].mxu0
  %v925 = vpop.f32.mrb[0].mxu0
  %926 = vdwg.mxu0
  %v927 = vadd.f32 %v107, %v922
  %v928 = vtanh.pop %v927
  %v929 = vmul.f32 %v928, 0.5
  %v930 = vadd.f32 %v929, 0.5
  %v931 = vmul.f32 %v930, %v833
  %933 = vrot.lane.b32.xlu0 %v928, 64
  %v934 = vpop.permute.xlu0 %933
  %v936 = vmul.f32 %v930, %v934
  %938 = vrot.lane.b32.xlu0 %v936, 32
  %v939 = vpop.permute.xlu0 %938
  %v941 = vadd.f32 %v931, %v939
  %v942 = vtanh.pop %v941
  %944 = vrot.lane.b32.xlu0 %v942, 64
  %v945 = vpop.permute.xlu0 %944
  %v947 = vmul.f32 %v930, %v945
  %v948 = vpack.c.bf16 %v947, %v947
  %950 = vrot.lane.b32.xlu0 %v948, 32
  %v951 = vpop.permute.xlu0 %950
  %v953 = vsel %vm123, %v951, 0
  %955 = vmatprep.subr.bf16.mxu0 0
  %956 = vmatpush1.bf16.msra.mxu0 %v120
  %957 = vmatprep.subr.bf16.mxu0 0
  %958 = vmatpush1.bf16.msra.mxu0 %v121
  %959 = vmatprep.subr.bf16.mxu0 0
  %960 = vmatpush1.bf16.msra.mxu0 0
  %961 = vmatprep.subr.bf16.mxu0 0
  %962 = vmatpush1.bf16.msra.mxu0 0
  %963 = vmatprep.subr.bf16.mxu0 0
  %964 = vmatpush1.bf16.msra.mxu0 0
  %965 = vmatprep.subr.bf16.mxu0 0
  %966 = vmatpush1.bf16.msra.mxu0 0
  %967 = vmatprep.subr.bf16.mxu0 0
  %968 = vmatpush1.bf16.msra.mxu0 0
  %969 = vmatprep.subr.bf16.mxu0 0
  %970 = vmatpush1.bf16.msra.mxu0 0
  %971 = vmatprep.subr.bf16.mxu0 0
  %972 = vmatpush1.bf16.msra.mxu0 0
  %973 = vmatprep.subr.bf16.mxu0 0
  %974 = vmatpush1.bf16.msra.mxu0 0
  %975 = vmatprep.subr.bf16.mxu0 0
  %976 = vmatpush1.bf16.msra.mxu0 0
  %977 = vmatprep.subr.bf16.mxu0 0
  %978 = vmatpush1.bf16.msra.mxu0 0
  %979 = vmatprep.subr.bf16.mxu0 0
  %980 = vmatpush1.bf16.msra.mxu0 0
  %981 = vmatprep.subr.bf16.mxu0 0
  %982 = vmatpush1.bf16.msra.mxu0 0
  %983 = vmatprep.subr.bf16.mxu0 0
  %984 = vmatpush1.bf16.msra.mxu0 0
  %985 = vmatprep.subr.bf16.mxu0 0
  %986 = vmatpush1.bf16.msra.mxu0 0
  %987 = vmatprep.mubr.bf16.mxu0 0
  %988 = vmatmul.mubr.bf16.gmra.mrb[0].mxu0 %v953
  %v989 = vpop.f32.mrb[0].mxu0
  %v990 = vadd.f32 %v192, %v989
  %v991 = vpop.f32.mrb[0].mxu0
  %v992 = vpop.f32.mrb[0].mxu0
  %v993 = vpop.f32.mrb[0].mxu0
  %994 = vdwg.mxu0
  %v995 = vld [vmem:[%s1 + $0x58] sm:$0xff]
  %v996 = vld [vmem:[%s1 + $0x60] sm:$0xff]
  %v997 = vld [vmem:[%s1 + $0x68] sm:$0xff]
  %v998 = vld [vmem:[%s1 + $0x70] sm:$0xff]
  %v999 = vpack.c.bf16 %v996, %v995
  %v1000 = vpack.c.bf16 %v998, %v997
  %1001 = vmatprep.subr.bf16.mxu0 0
  %1002 = vmatpush1.bf16.msra.mxu0 %v999
  %1003 = vmatprep.subr.bf16.mxu0 0
  %1004 = vmatpush1.bf16.msra.mxu0 %v1000
  %1005 = vmatprep.subr.bf16.mxu0 0
  %1006 = vmatpush1.bf16.msra.mxu0 0
  %1007 = vmatprep.subr.bf16.mxu0 0
  %1008 = vmatpush1.bf16.msra.mxu0 0
  %1009 = vmatprep.subr.bf16.mxu0 0
  %1010 = vmatpush1.bf16.msra.mxu0 0
  %1011 = vmatprep.subr.bf16.mxu0 0
  %1012 = vmatpush1.bf16.msra.mxu0 0
  %1013 = vmatprep.subr.bf16.mxu0 0
  %1014 = vmatpush1.bf16.msra.mxu0 0
  %1015 = vmatprep.subr.bf16.mxu0 0
  %1016 = vmatpush1.bf16.msra.mxu0 0
  %1017 = vmatprep.subr.bf16.mxu0 0
  %1018 = vmatpush1.bf16.msra.mxu0 0
  %1019 = vmatprep.subr.bf16.mxu0 0
  %1020 = vmatpush1.bf16.msra.mxu0 0
  %1021 = vmatprep.subr.bf16.mxu0 0
  %1022 = vmatpush1.bf16.msra.mxu0 0
  %1023 = vmatprep.subr.bf16.mxu0 0
  %1024 = vmatpush1.bf16.msra.mxu0 0
  %1025 = vmatprep.subr.bf16.mxu0 0
  %1026 = vmatpush1.bf16.msra.mxu0 0
  %1027 = vmatprep.subr.bf16.mxu0 0
  %1028 = vmatpush1.bf16.msra.mxu0 0
  %1029 = vmatprep.subr.bf16.mxu0 0
  %1030 = vmatpush1.bf16.msra.mxu0 0
  %1031 = vmatprep.subr.bf16.mxu0 0
  %1032 = vmatpush1.bf16.msra.mxu0 0
  %1033 = vmatprep.mubr.bf16.mxu0 0
  %1034 = vmatmul.mubr.bf16.gmra.mrb[0].mxu0 %v125
  %v1035 = vpop.f32.mrb[0].mxu0
  %v1036 = vadd.f32 0.0, %v1035
  %v1037 = vpop.f32.mrb[0].mxu0
  %v1038 = vpop.f32.mrb[0].mxu0
  %v1039 = vpop.f32.mrb[0].mxu0
  %1040 = vdwg.mxu0
  %v1041 = vadd.f32 %v234, %v1036
  %v1042 = vtanh.pop %v1041
  %v1043 = vmul.f32 %v1042, 0.5
  %v1044 = vadd.f32 %v1043, 0.5
  %v1045 = vmul.f32 %v1044, 0.0
  %1047 = vrot.lane.b32.xlu0 %v1042, 64
  %v1048 = vpop.permute.xlu0 %1047
  %v1050 = vmul.f32 %v1044, %v1048
  %1052 = vrot.lane.b32.xlu0 %v1050, 32
  %v1053 = vpop.permute.xlu0 %1052
  %v1055 = vadd.f32 %v1045, %v1053
  %v1056 = vtanh.pop %v1055
  %1058 = vrot.lane.b32.xlu0 %v1056, 64
  %v1059 = vpop.permute.xlu0 %1058
  %v1061 = vmul.f32 %v1044, %v1059
  %v1062 = vpack.c.bf16 %v1061, %v1061
  %1064 = vrot.lane.b32.xlu0 %v1062, 32
  %v1065 = vpop.permute.xlu0 %1064
  %v1067 = vsel %vm123, %v1065, 0
  %1069 = vmatprep.subr.bf16.mxu0 0
  %1070 = vmatpush1.bf16.msra.mxu0 %v999
  %1071 = vmatprep.subr.bf16.mxu0 0
  %1072 = vmatpush1.bf16.msra.mxu0 %v1000
  %1073 = vmatprep.subr.bf16.mxu0 0
  %1074 = vmatpush1.bf16.msra.mxu0 0
  %1075 = vmatprep.subr.bf16.mxu0 0
  %1076 = vmatpush1.bf16.msra.mxu0 0
  %1077 = vmatprep.subr.bf16.mxu0 0
  %1078 = vmatpush1.bf16.msra.mxu0 0
  %1079 = vmatprep.subr.bf16.mxu0 0
  %1080 = vmatpush1.bf16.msra.mxu0 0
  %1081 = vmatprep.subr.bf16.mxu0 0
  %1082 = vmatpush1.bf16.msra.mxu0 0
  %1083 = vmatprep.subr.bf16.mxu0 0
  %1084 = vmatpush1.bf16.msra.mxu0 0
  %1085 = vmatprep.subr.bf16.mxu0 0
  %1086 = vmatpush1.bf16.msra.mxu0 0
  %1087 = vmatprep.subr.bf16.mxu0 0
  %1088 = vmatpush1.bf16.msra.mxu0 0
  %1089 = vmatprep.subr.bf16.mxu0 0
  %1090 = vmatpush1.bf16.msra.mxu0 0
  %1091 = vmatprep.subr.bf16.mxu0 0
  %1092 = vmatpush1.bf16.msra.mxu0 0
  %1093 = vmatprep.subr.bf16.mxu0 0
  %1094 = vmatpush1.bf16.msra.mxu0 0
  %1095 = vmatprep.subr.bf16.mxu0 0
  %1096 = vmatpush1.bf16.msra.mxu0 0
  %1097 = vmatprep.subr.bf16.mxu0 0
  %1098 = vmatpush1.bf16.msra.mxu0 0
  %1099 = vmatprep.subr.bf16.mxu0 0
  %1100 = vmatpush1.bf16.msra.mxu0 0
  %1101 = vmatprep.mubr.bf16.mxu0 0
  %1102 = vmatmul.mubr.bf16.gmra.mrb[0].mxu0 %v1067
  %v1103 = vpop.f32.mrb[0].mxu0
  %v1104 = vadd.f32 0.0, %v1103
  %v1105 = vpop.f32.mrb[0].mxu0
  %v1106 = vpop.f32.mrb[0].mxu0
  %v1107 = vpop.f32.mrb[0].mxu0
  %1108 = vdwg.mxu0
  %v1109 = vadd.f32 %v342, %v1104
  %v1110 = vtanh.pop %v1109
  %v1111 = vmul.f32 %v1110, 0.5
  %v1112 = vadd.f32 %v1111, 0.5
  %v1113 = vmul.f32 %v1112, %v1055
  %1115 = vrot.lane.b32.xlu0 %v1110, 64
  %v1116 = vpop.permute.xlu0 %1115
  %v1118 = vmul.f32 %v1112, %v1116
  %1120 = vrot.lane.b32.xlu0 %v1118, 32
  %v1121 = vpop.permute.xlu0 %1120
  %v1123 = vadd.f32 %v1113, %v1121
  %v1124 = vtanh.pop %v1123
  %1126 = vrot.lane.b32.xlu0 %v1124, 64
  %v1127 = vpop.permute.xlu0 %1126
  %v1129 = vmul.f32 %v1112, %v1127
  %v1130 = vpack.c.bf16 %v1129, %v1129
  %1132 = vrot.lane.b32.xlu0 %v1130, 32
  %v1133 = vpop.permute.xlu0 %1132
  %v1135 = vsel %vm123, %v1133, 0
  %1137 = vmatprep.subr.bf16.mxu0 0
  %1138 = vmatpush1.bf16.msra.mxu0 %v999
  %1139 = vmatprep.subr.bf16.mxu0 0
  %1140 = vmatpush1.bf16.msra.mxu0 %v1000
  %1141 = vmatprep.subr.bf16.mxu0 0
  %1142 = vmatpush1.bf16.msra.mxu0 0
  %1143 = vmatprep.subr.bf16.mxu0 0
  %1144 = vmatpush1.bf16.msra.mxu0 0
  %1145 = vmatprep.subr.bf16.mxu0 0
  %1146 = vmatpush1.bf16.msra.mxu0 0
  %1147 = vmatprep.subr.bf16.mxu0 0
  %1148 = vmatpush1.bf16.msra.mxu0 0
  %1149 = vmatprep.subr.bf16.mxu0 0
  %1150 = vmatpush1.bf16.msra.mxu0 0
  %1151 = vmatprep.subr.bf16.mxu0 0
  %1152 = vmatpush1.bf16.msra.mxu0 0
  %1153 = vmatprep.subr.bf16.mxu0 0
  %1154 = vmatpush1.bf16.msra.mxu0 0
  %1155 = vmatprep.subr.bf16.mxu0 0
  %1156 = vmatpush1.bf16.msra.mxu0 0
  %1157 = vmatprep.subr.bf16.mxu0 0
  %1158 = vmatpush1.bf16.msra.mxu0 0
  %1159 = vmatprep.subr.bf16.mxu0 0
  %1160 = vmatpush1.bf16.msra.mxu0 0
  %1161 = vmatprep.subr.bf16.mxu0 0
  %1162 = vmatpush1.bf16.msra.mxu0 0
  %1163 = vmatprep.subr.bf16.mxu0 0
  %1164 = vmatpush1.bf16.msra.mxu0 0
  %1165 = vmatprep.subr.bf16.mxu0 0
  %1166 = vmatpush1.bf16.msra.mxu0 0
  %1167 = vmatprep.subr.bf16.mxu0 0
  %1168 = vmatpush1.bf16.msra.mxu0 0
  %1169 = vmatprep.mubr.bf16.mxu0 0
  %1170 = vmatmul.mubr.bf16.gmra.mrb[0].mxu0 %v1135
  %v1171 = vpop.f32.mrb[0].mxu0
  %v1172 = vadd.f32 0.0, %v1171
  %v1173 = vpop.f32.mrb[0].mxu0
  %v1174 = vpop.f32.mrb[0].mxu0
  %v1175 = vpop.f32.mrb[0].mxu0
  %1176 = vdwg.mxu0
  %v1177 = vadd.f32 %v450, %v1172
  %v1178 = vtanh.pop %v1177
  %v1179 = vmul.f32 %v1178, 0.5
  %v1180 = vadd.f32 %v1179, 0.5
  %v1181 = vmul.f32 %v1180, %v1123
  %1183 = vrot.lane.b32.xlu0 %v1178, 64
  %v1184 = vpop.permute.xlu0 %1183
  %v1186 = vmul.f32 %v1180, %v1184
  %1188 = vrot.lane.b32.xlu0 %v1186, 32
  %v1189 = vpop.permute.xlu0 %1188
  %v1191 = vadd.f32 %v1181, %v1189
  %v1192 = vtanh.pop %v1191
  %1194 = vrot.lane.b32.xlu0 %v1192, 64
  %v1195 = vpop.permute.xlu0 %1194
  %v1197 = vmul.f32 %v1180, %v1195
  %v1198 = vpack.c.bf16 %v1197, %v1197
  %1200 = vrot.lane.b32.xlu0 %v1198, 32
  %v1201 = vpop.permute.xlu0 %1200
  %v1203 = vsel %vm123, %v1201, 0
  %1205 = vmatprep.subr.bf16.mxu0 0
  %1206 = vmatpush1.bf16.msra.mxu0 %v999
  %1207 = vmatprep.subr.bf16.mxu0 0
  %1208 = vmatpush1.bf16.msra.mxu0 %v1000
  %1209 = vmatprep.subr.bf16.mxu0 0
  %1210 = vmatpush1.bf16.msra.mxu0 0
  %1211 = vmatprep.subr.bf16.mxu0 0
  %1212 = vmatpush1.bf16.msra.mxu0 0
  %1213 = vmatprep.subr.bf16.mxu0 0
  %1214 = vmatpush1.bf16.msra.mxu0 0
  %1215 = vmatprep.subr.bf16.mxu0 0
  %1216 = vmatpush1.bf16.msra.mxu0 0
  %1217 = vmatprep.subr.bf16.mxu0 0
  %1218 = vmatpush1.bf16.msra.mxu0 0
  %1219 = vmatprep.subr.bf16.mxu0 0
  %1220 = vmatpush1.bf16.msra.mxu0 0
  %1221 = vmatprep.subr.bf16.mxu0 0
  %1222 = vmatpush1.bf16.msra.mxu0 0
  %1223 = vmatprep.subr.bf16.mxu0 0
  %1224 = vmatpush1.bf16.msra.mxu0 0
  %1225 = vmatprep.subr.bf16.mxu0 0
  %1226 = vmatpush1.bf16.msra.mxu0 0
  %1227 = vmatprep.subr.bf16.mxu0 0
  %1228 = vmatpush1.bf16.msra.mxu0 0
  %1229 = vmatprep.subr.bf16.mxu0 0
  %1230 = vmatpush1.bf16.msra.mxu0 0
  %1231 = vmatprep.subr.bf16.mxu0 0
  %1232 = vmatpush1.bf16.msra.mxu0 0
  %1233 = vmatprep.subr.bf16.mxu0 0
  %1234 = vmatpush1.bf16.msra.mxu0 0
  %1235 = vmatprep.subr.bf16.mxu0 0
  %1236 = vmatpush1.bf16.msra.mxu0 0
  %1237 = vmatprep.mubr.bf16.mxu0 0
  %1238 = vmatmul.mubr.bf16.gmra.mrb[0].mxu0 %v1203
  %v1239 = vpop.f32.mrb[0].mxu0
  %v1240 = vadd.f32 0.0, %v1239
  %v1241 = vpop.f32.mrb[0].mxu0
  %v1242 = vpop.f32.mrb[0].mxu0
  %v1243 = vpop.f32.mrb[0].mxu0
  %1244 = vdwg.mxu0
  %v1245 = vadd.f32 %v558, %v1240
  %v1246 = vtanh.pop %v1245
  %v1247 = vmul.f32 %v1246, 0.5
  %v1248 = vadd.f32 %v1247, 0.5
  %v1249 = vmul.f32 %v1248, %v1191
  %1251 = vrot.lane.b32.xlu0 %v1246, 64
  %v1252 = vpop.permute.xlu0 %1251
  %v1254 = vmul.f32 %v1248, %v1252
  %1256 = vrot.lane.b32.xlu0 %v1254, 32
  %v1257 = vpop.permute.xlu0 %1256
  %v1259 = vadd.f32 %v1249, %v1257
  %v1260 = vtanh.pop %v1259
  %1262 = vrot.lane.b32.xlu0 %v1260, 64
  %v1263 = vpop.permute.xlu0 %1262
  %v1265 = vmul.f32 %v1248, %v1263
  %v1266 = vpack.c.bf16 %v1265, %v1265
  %1268 = vrot.lane.b32.xlu0 %v1266, 32
  %v1269 = vpop.permute.xlu0 %1268
  %v1271 = vsel %vm123, %v1269, 0
  %1273 = vmatprep.subr.bf16.mxu0 0
  %1274 = vmatpush1.bf16.msra.mxu0 %v999
  %1275 = vmatprep.subr.bf16.mxu0 0
  %1276 = vmatpush1.bf16.msra.mxu0 %v1000
  %1277 = vmatprep.subr.bf16.mxu0 0
  %1278 = vmatpush1.bf16.msra.mxu0 0
  %1279 = vmatprep.subr.bf16.mxu0 0
  %1280 = vmatpush1.bf16.msra.mxu0 0
  %1281 = vmatprep.subr.bf16.mxu0 0
  %1282 = vmatpush1.bf16.msra.mxu0 0
  %1283 = vmatprep.subr.bf16.mxu0 0
  %1284 = vmatpush1.bf16.msra.mxu0 0
  %1285 = vmatprep.subr.bf16.mxu0 0
  %1286 = vmatpush1.bf16.msra.mxu0 0
  %1287 = vmatprep.subr.bf16.mxu0 0
  %1288 = vmatpush1.bf16.msra.mxu0 0
  %1289 = vmatprep.subr.bf16.mxu0 0
  %1290 = vmatpush1.bf16.msra.mxu0 0
  %1291 = vmatprep.subr.bf16.mxu0 0
  %1292 = vmatpush1.bf16.msra.mxu0 0
  %1293 = vmatprep.subr.bf16.mxu0 0
  %1294 = vmatpush1.bf16.msra.mxu0 0
  %1295 = vmatprep.subr.bf16.mxu0 0
  %1296 = vmatpush1.bf16.msra.mxu0 0
  %1297 = vmatprep.subr.bf16.mxu0 0
  %1298 = vmatpush1.bf16.msra.mxu0 0
  %1299 = vmatprep.subr.bf16.mxu0 0
  %1300 = vmatpush1.bf16.msra.mxu0 0
  %1301 = vmatprep.subr.bf16.mxu0 0
  %1302 = vmatpush1.bf16.msra.mxu0 0
  %1303 = vmatprep.subr.bf16.mxu0 0
  %1304 = vmatpush1.bf16.msra.mxu0 0
  %1305 = vmatprep.mubr.bf16.mxu0 0
  %1306 = vmatmul.mubr.bf16.gmra.mrb[0].mxu0 %v1271
  %v1307 = vpop.f32.mrb[0].mxu0
  %v1308 = vadd.f32 0.0, %v1307
  %v1309 = vpop.f32.mrb[0].mxu0
  %v1310 = vpop.f32.mrb[0].mxu0
  %v1311 = vpop.f32.mrb[0].mxu0
  %1312 = vdwg.mxu0
  %v1313 = vadd.f32 %v666, %v1308
  %v1314 = vtanh.pop %v1313
  %v1315 = vmul.f32 %v1314, 0.5
  %v1316 = vadd.f32 %v1315, 0.5
  %v1317 = vmul.f32 %v1316, %v1259
  %1319 = vrot.lane.b32.xlu0 %v1314, 64
  %v1320 = vpop.permute.xlu0 %1319
  %v1322 = vmul.f32 %v1316, %v1320
  %1324 = vrot.lane.b32.xlu0 %v1322, 32
  %v1325 = vpop.permute.xlu0 %1324
  %v1327 = vadd.f32 %v1317, %v1325
  %v1328 = vtanh.pop %v1327
  %1330 = vrot.lane.b32.xlu0 %v1328, 64
  %v1331 = vpop.permute.xlu0 %1330
  %v1333 = vmul.f32 %v1316, %v1331
  %v1334 = vpack.c.bf16 %v1333, %v1333
  %1336 = vrot.lane.b32.xlu0 %v1334, 32
  %v1337 = vpop.permute.xlu0 %1336
  %v1339 = vsel %vm123, %v1337, 0
  %1341 = vmatprep.subr.bf16.mxu0 0
  %1342 = vmatpush1.bf16.msra.mxu0 %v999
  %1343 = vmatprep.subr.bf16.mxu0 0
  %1344 = vmatpush1.bf16.msra.mxu0 %v1000
  %1345 = vmatprep.subr.bf16.mxu0 0
  %1346 = vmatpush1.bf16.msra.mxu0 0
  %1347 = vmatprep.subr.bf16.mxu0 0
  %1348 = vmatpush1.bf16.msra.mxu0 0
  %1349 = vmatprep.subr.bf16.mxu0 0
  %1350 = vmatpush1.bf16.msra.mxu0 0
  %1351 = vmatprep.subr.bf16.mxu0 0
  %1352 = vmatpush1.bf16.msra.mxu0 0
  %1353 = vmatprep.subr.bf16.mxu0 0
  %1354 = vmatpush1.bf16.msra.mxu0 0
  %1355 = vmatprep.subr.bf16.mxu0 0
  %1356 = vmatpush1.bf16.msra.mxu0 0
  %1357 = vmatprep.subr.bf16.mxu0 0
  %1358 = vmatpush1.bf16.msra.mxu0 0
  %1359 = vmatprep.subr.bf16.mxu0 0
  %1360 = vmatpush1.bf16.msra.mxu0 0
  %1361 = vmatprep.subr.bf16.mxu0 0
  %1362 = vmatpush1.bf16.msra.mxu0 0
  %1363 = vmatprep.subr.bf16.mxu0 0
  %1364 = vmatpush1.bf16.msra.mxu0 0
  %1365 = vmatprep.subr.bf16.mxu0 0
  %1366 = vmatpush1.bf16.msra.mxu0 0
  %1367 = vmatprep.subr.bf16.mxu0 0
  %1368 = vmatpush1.bf16.msra.mxu0 0
  %1369 = vmatprep.subr.bf16.mxu0 0
  %1370 = vmatpush1.bf16.msra.mxu0 0
  %1371 = vmatprep.subr.bf16.mxu0 0
  %1372 = vmatpush1.bf16.msra.mxu0 0
  %1373 = vmatprep.mubr.bf16.mxu0 0
  %1374 = vmatmul.mubr.bf16.gmra.mrb[0].mxu0 %v1339
  %v1375 = vpop.f32.mrb[0].mxu0
  %v1376 = vadd.f32 0.0, %v1375
  %v1377 = vpop.f32.mrb[0].mxu0
  %v1378 = vpop.f32.mrb[0].mxu0
  %v1379 = vpop.f32.mrb[0].mxu0
  %1380 = vdwg.mxu0
  %v1381 = vadd.f32 %v774, %v1376
  %v1382 = vtanh.pop %v1381
  %v1383 = vmul.f32 %v1382, 0.5
  %v1384 = vadd.f32 %v1383, 0.5
  %v1385 = vmul.f32 %v1384, %v1327
  %1387 = vrot.lane.b32.xlu0 %v1382, 64
  %v1388 = vpop.permute.xlu0 %1387
  %v1390 = vmul.f32 %v1384, %v1388
  %1392 = vrot.lane.b32.xlu0 %v1390, 32
  %v1393 = vpop.permute.xlu0 %1392
  %v1395 = vadd.f32 %v1385, %v1393
  %v1396 = vtanh.pop %v1395
  %1398 = vrot.lane.b32.xlu0 %v1396, 64
  %v1399 = vpop.permute.xlu0 %1398
  %v1401 = vmul.f32 %v1384, %v1399
  %v1402 = vpack.c.bf16 %v1401, %v1401
  %1404 = vrot.lane.b32.xlu0 %v1402, 32
  %v1405 = vpop.permute.xlu0 %1404
  %v1407 = vsel %vm123, %v1405, 0
  %1409 = vmatprep.subr.bf16.mxu0 0
  %1410 = vmatpush1.bf16.msra.mxu0 %v999
  %1411 = vmatprep.subr.bf16.mxu0 0
  %1412 = vmatpush1.bf16.msra.mxu0 %v1000
  %1413 = vmatprep.subr.bf16.mxu0 0
  %1414 = vmatpush1.bf16.msra.mxu0 0
  %1415 = vmatprep.subr.bf16.mxu0 0
  %1416 = vmatpush1.bf16.msra.mxu0 0
  %1417 = vmatprep.subr.bf16.mxu0 0
  %1418 = vmatpush1.bf16.msra.mxu0 0
  %1419 = vmatprep.subr.bf16.mxu0 0
  %1420 = vmatpush1.bf16.msra.mxu0 0
  %1421 = vmatprep.subr.bf16.mxu0 0
  %1422 = vmatpush1.bf16.msra.mxu0 0
  %1423 = vmatprep.subr.bf16.mxu0 0
  %1424 = vmatpush1.bf16.msra.mxu0 0
  %1425 = vmatprep.subr.bf16.mxu0 0
  %1426 = vmatpush1.bf16.msra.mxu0 0
  %1427 = vmatprep.subr.bf16.mxu0 0
  %1428 = vmatpush1.bf16.msra.mxu0 0
  %1429 = vmatprep.subr.bf16.mxu0 0
  %1430 = vmatpush1.bf16.msra.mxu0 0
  %1431 = vmatprep.subr.bf16.mxu0 0
  %1432 = vmatpush1.bf16.msra.mxu0 0
  %1433 = vmatprep.subr.bf16.mxu0 0
  %1434 = vmatpush1.bf16.msra.mxu0 0
  %1435 = vmatprep.subr.bf16.mxu0 0
  %1436 = vmatpush1.bf16.msra.mxu0 0
  %1437 = vmatprep.subr.bf16.mxu0 0
  %1438 = vmatpush1.bf16.msra.mxu0 0
  %1439 = vmatprep.subr.bf16.mxu0 0
  %1440 = vmatpush1.bf16.msra.mxu0 0
  %1441 = vmatprep.mubr.bf16.mxu0 0
  %1442 = vmatmul.mubr.bf16.gmra.mrb[0].mxu0 %v1407
  %v1443 = vpop.f32.mrb[0].mxu0
  %v1444 = vadd.f32 0.0, %v1443
  %v1445 = vpop.f32.mrb[0].mxu0
  %v1446 = vpop.f32.mrb[0].mxu0
  %v1447 = vpop.f32.mrb[0].mxu0
  %1448 = vdwg.mxu0
  %v1449 = vadd.f32 %v882, %v1444
  %v1450 = vtanh.pop %v1449
  %v1451 = vmul.f32 %v1450, 0.5
  %v1452 = vadd.f32 %v1451, 0.5
  %v1453 = vmul.f32 %v1452, %v1395
  %1455 = vrot.lane.b32.xlu0 %v1450, 64
  %v1456 = vpop.permute.xlu0 %1455
  %v1458 = vmul.f32 %v1452, %v1456
  %1460 = vrot.lane.b32.xlu0 %v1458, 32
  %v1461 = vpop.permute.xlu0 %1460
  %v1463 = vadd.f32 %v1453, %v1461
  %v1464 = vtanh.pop %v1463
  %1466 = vrot.lane.b32.xlu0 %v1464, 64
  %v1467 = vpop.permute.xlu0 %1466
  %v1469 = vmul.f32 %v1452, %v1467
  %v1470 = vpack.c.bf16 %v1469, %v1469
  %1472 = vrot.lane.b32.xlu0 %v1470, 32
  %v1473 = vpop.permute.xlu0 %1472
  %v1475 = vsel %vm123, %v1473, 0
  %1477 = vmatprep.subr.bf16.mxu0 0
  %1478 = vmatpush1.bf16.msra.mxu0 %v999
  %1479 = vmatprep.subr.bf16.mxu0 0
  %1480 = vmatpush1.bf16.msra.mxu0 %v1000
  %1481 = vmatprep.subr.bf16.mxu0 0
  %1482 = vmatpush1.bf16.msra.mxu0 0
  %1483 = vmatprep.subr.bf16.mxu0 0
  %1484 = vmatpush1.bf16.msra.mxu0 0
  %1485 = vmatprep.subr.bf16.mxu0 0
  %1486 = vmatpush1.bf16.msra.mxu0 0
  %1487 = vmatprep.subr.bf16.mxu0 0
  %1488 = vmatpush1.bf16.msra.mxu0 0
  %1489 = vmatprep.subr.bf16.mxu0 0
  %1490 = vmatpush1.bf16.msra.mxu0 0
  %1491 = vmatprep.subr.bf16.mxu0 0
  %1492 = vmatpush1.bf16.msra.mxu0 0
  %1493 = vmatprep.subr.bf16.mxu0 0
  %1494 = vmatpush1.bf16.msra.mxu0 0
  %1495 = vmatprep.subr.bf16.mxu0 0
  %1496 = vmatpush1.bf16.msra.mxu0 0
  %1497 = vmatprep.subr.bf16.mxu0 0
  %1498 = vmatpush1.bf16.msra.mxu0 0
  %1499 = vmatprep.subr.bf16.mxu0 0
  %1500 = vmatpush1.bf16.msra.mxu0 0
  %1501 = vmatprep.subr.bf16.mxu0 0
  %1502 = vmatpush1.bf16.msra.mxu0 0
  %1503 = vmatprep.subr.bf16.mxu0 0
  %1504 = vmatpush1.bf16.msra.mxu0 0
  %1505 = vmatprep.subr.bf16.mxu0 0
  %1506 = vmatpush1.bf16.msra.mxu0 0
  %1507 = vmatprep.subr.bf16.mxu0 0
  %1508 = vmatpush1.bf16.msra.mxu0 0
  %1509 = vmatprep.mubr.bf16.mxu0 0
  %1510 = vmatmul.mubr.bf16.gmra.mrb[0].mxu0 %v1475
  %v1511 = vpop.f32.mrb[0].mxu0
  %v1512 = vadd.f32 0.0, %v1511
  %v1513 = vpop.f32.mrb[0].mxu0
  %v1514 = vpop.f32.mrb[0].mxu0
  %v1515 = vpop.f32.mrb[0].mxu0
  %1516 = vdwg.mxu0
  %v1517 = vadd.f32 %v990, %v1512
  %v1518 = vtanh.pop %v1517
  %v1519 = vmul.f32 %v1518, 0.5
  %v1520 = vadd.f32 %v1519, 0.5
  %v1521 = vmul.f32 %v1520, %v1463
  %1523 = vrot.lane.b32.xlu0 %v1518, 64
  %v1524 = vpop.permute.xlu0 %1523
  %v1526 = vmul.f32 %v1520, %v1524
  %1528 = vrot.lane.b32.xlu0 %v1526, 32
  %v1529 = vpop.permute.xlu0 %1528
  %v1531 = vadd.f32 %v1521, %v1529
  %v1532 = vtanh.pop %v1531
  %1534 = vrot.lane.b32.xlu0 %v1532, 64
  %v1535 = vpop.permute.xlu0 %1534
  %v1537 = vmul.f32 %v1520, %v1535
  %v1538 = vld [vmem:[%s1 + $0x80] sm:$0xff]
  %v1539 = vld [vmem:[%s1 + $0x88] sm:$0xff]
  %v1540 = vld [vmem:[%s1 + $0x90] sm:$0xff]
  %v1541 = vld [vmem:[%s1 + $0x98] sm:$0xff]
  %v1542 = vpack.c.bf16 %v1539, %v1538
  %v1543 = vpack.c.bf16 %v1541, %v1540
  %v1544 = vld [vmem:[%s1 + $0xa0] sm:$0x1]
  %v1545 = vld [vmem:[%s1 + $0xa8] sm:$0x1]
  %v1546 = vld [vmem:[%s1 + $0xb0] sm:$0x1]
  %v1547 = vpack.c.bf16 %v1537, %v1537
  %v1548 = vlaneseq
  %v1549 = vshrl.u32 %v1548, 7
  %v1550 = vsub.s32 0, %v1549
  %v1551 = vrot.slane %v1544, %v1550
  %1553 = vrot.lane.b32.xlu0 %v1547, 32
  %v1554 = vpop.permute.xlu0 %1553
  %v1556 = vsel %vm123, %v1554, 0
  %1558 = vmatprep.subr.bf16.mxu0 0
  %1559 = vmatpush1.bf16.msra.mxu0 %v1542
  %1560 = vmatprep.subr.bf16.mxu0 0
  %1561 = vmatpush1.bf16.msra.mxu0 %v1543
  %1562 = vmatprep.subr.bf16.mxu0 0
  %1563 = vmatpush1.bf16.msra.mxu0 0
  %1564 = vmatprep.subr.bf16.mxu0 0
  %1565 = vmatpush1.bf16.msra.mxu0 0
  %1566 = vmatprep.subr.bf16.mxu0 0
  %1567 = vmatpush1.bf16.msra.mxu0 0
  %1568 = vmatprep.subr.bf16.mxu0 0
  %1569 = vmatpush1.bf16.msra.mxu0 0
  %1570 = vmatprep.subr.bf16.mxu0 0
  %1571 = vmatpush1.bf16.msra.mxu0 0
  %1572 = vmatprep.subr.bf16.mxu0 0
  %1573 = vmatpush1.bf16.msra.mxu0 0
  %1574 = vmatprep.subr.bf16.mxu0 0
  %1575 = vmatpush1.bf16.msra.mxu0 0
  %1576 = vmatprep.subr.bf16.mxu0 0
  %1577 = vmatpush1.bf16.msra.mxu0 0
  %1578 = vmatprep.subr.bf16.mxu0 0
  %1579 = vmatpush1.bf16.msra.mxu0 0
  %1580 = vmatprep.subr.bf16.mxu0 0
  %1581 = vmatpush1.bf16.msra.mxu0 0
  %1582 = vmatprep.subr.bf16.mxu0 0
  %1583 = vmatpush1.bf16.msra.mxu0 0
  %1584 = vmatprep.subr.bf16.mxu0 0
  %1585 = vmatpush1.bf16.msra.mxu0 0
  %1586 = vmatprep.subr.bf16.mxu0 0
  %1587 = vmatpush1.bf16.msra.mxu0 0
  %1588 = vmatprep.subr.bf16.mxu0 0
  %1589 = vmatpush1.bf16.msra.mxu0 0
  %1590 = vmatprep.mubr.bf16.mxu0 0
  %1591 = vmatmul.mubr.bf16.gmra.mrb[0].mxu0 %v1556
  %v1592 = vpop.f32.mrb[0].mxu0
  %v1593 = vadd.f32 %v1551, %v1592
  %v1594 = vpop.f32.mrb[0].mxu0
  %v1595 = vpop.f32.mrb[0].mxu0
  %v1596 = vpop.f32.mrb[0].mxu0
  %1597 = vdwg.mxu0
  %v1598 = vmax.f32 %v1593, 0.0
  %v1599 = vlaneseq
  %v1600 = vshrl.u32 %v1599, 7
  %v1601 = vsub.s32 0, %v1600
  %v1602 = vrot.slane %v1545, %v1601
  %v1603 = vmul.f32 %v1598, %v1602
  %v1604 = vsel %vm32, %v1603, 0.0
  %1605 = vadd.xlane.f32.xlu0 %v1604
  %v1606 = vpop.xlane.xlu0 %1605
  %v1607 = vlaneseq
  %v1608 = vshrl.u32 %v1607, 7
  %v1609 = vsub.s32 0, %v1608
  %v1610 = vrot.slane %v1546, %v1609
  %v1611 = vadd.f32 %v1606, %v1610
  %vm1612 = vcmask 7168
  %1613 = vst.msk [vmem:[%s2] sm:$0xff] %vm1612, %v1611
  // Predicated region
  $region10: #{model_forward.1} parent=0 // pred_check
    _
  $region11: #{model_forward.1} parent=0 // pred_check_branch
    %1615 = sbr.rel (0) target = $region13
  $region12: #{model_forward.1} parent=0 // pred_region
    _
  $region13: #{model_forward.1} parent=0 // pred_fallthru
    _
  // Predicated region
  $region14: #{model_forward.1} parent=0 // pred_check
    _
  $region15: #{model_forward.1} parent=0 // pred_check_branch
    %1617 = sbr.rel (0) target = $region17
  $region16: #{model_forward.1} parent=0 // pred_region
    _
  $region17: #{model_forward.1} parent=0 // pred_fallthru
    _

</llo_original>
